<compile_context>
chip_gen: v6e
topology: v6e:2x2x1
jax: 0.10.0
libtpu: 0.0.40
codegen_flags: <defaults>
</compile_context>

<pallas_src>
import functools

import jax
import jax.numpy as jnp
import numpy as np
from jax.experimental import pallas as pl
from jax.experimental.pallas import tpu as pltpu

LANE = 128


def _round_up(n, m):
    return ((n + m - 1) // m) * m


def _mlp_kernel(n_layers, stage_dims, *refs):
    """h = relu(h @ W_i + b_i) for every layer (output_relu=True).

    refs = (x_ref, w0, b0, w1, b1, ..., o_ref[, h_scratch])
    stage_dims: padded widths of intermediate activations (None if 1 layer).
    """
    has_scratch = stage_dims is not None
    x_ref = refs[0]
    o_ref = refs[-2] if has_scratch else refs[-1]
    h_ref = refs[-1] if has_scratch else None
    params = refs[1:-2] if has_scratch else refs[1:-1]

    h = x_ref[...]  # bf16, lane-padded (x ++ a ++ zeros)
    for i in range(n_layers):
        w_ref = params[2 * i]
        b_ref = params[2 * i + 1]
        h = jnp.dot(h.astype(jnp.bfloat16), w_ref[...],
                    preferred_element_type=jnp.float32) + b_ref[...]
        h = jnp.maximum(h, 0.0)  # ReLU after every layer (output_relu=True)
        if has_scratch and i < n_layers - 1:
            d = stage_dims[i]
            h_ref[:, :d] = h      # stage through VMEM to bound live ranges
            h = h_ref[:, :d]
    o_ref[...] = h.astype(o_ref.dtype)


def mlp_forward(x, a, weights, biases, *, out_dim=None, block_b=None):
    """Fused MLP forward.

    weights: lane-padded bf16 weights from make_mlp_params (W0 already merged
             over the (x, a) input and K-padded to a multiple of 128).
    biases : list of (1, d_pad) f32 arrays.
    out_dim: unpadded output width; result is sliced to (B, out_dim).
    """
    has_action = a is not None
    n_layers = len(biases)
    B = x.shape[0]
    d_pad = biases[-1].shape[-1]
    k_pad = weights[0].shape[0]

    # ---- merge (x, a) into a single lane-padded bf16 input (outside hot loop)
    xa = jnp.concatenate([x, a], axis=-1) if has_action else x
    in_dim = xa.shape[1]
    assert in_dim <= k_pad
    if k_pad != in_dim:
        xa = jnp.pad(xa, ((0, 0), (0, k_pad - in_dim)))
    xa = xa.astype(jnp.bfloat16)

    # ---- batch tile: MXU-friendly granularity; keep >=2 grid steps if possible
    gran = 128  # MXU-row / sublane aligned for all of v5e/v6e/v7x
    if block_b is None:
        block_b = 512
    block_b = _round_up(min(block_b, max(B, 1)), gran)
    B_pad = _round_up(B, block_b)
    if B_pad // block_b == 1 and B_pad >= 2 * gran:
        block_b = _round_up(B_pad // 2, gran)  # let v7x's two TCs both work
        B_pad = _round_up(B, block_b)
    if B_pad != B:
        xa = jnp.pad(xa, ((0, B_pad - B), (0, 0)))

    params = []
    for w, b in zip(weights, biases):
        params.extend((w, b))

    stage_dims = tuple(b.shape[-1] for b in biases[:-1]) if n_layers > 1 else None
    d_stage_max = max(stage_dims) if stage_dims else 0

    param_bytes_raw = sum(int(np.prod(m.shape)) * m.dtype.itemsize for m in params)

    def build_call(buffer_params_once):
        def param_spec(shape):
            if buffer_params_once:
                return pl.BlockSpec(shape, lambda i: (0, 0),
                                    pipeline_mode=pl.Buffered(1))
            return pl.BlockSpec(shape, lambda i: (0, 0))

        in_specs = [pl.BlockSpec((block_b, k_pad), lambda i: (i, 0))]
        in_specs += [param_spec(m.shape) for m in params]
        scratch = ([pltpu.VMEM((block_b, d_stage_max), jnp.float32)]
                   if stage_dims else [])

        # VMEM budget with lane-padded widths; params counted once if Buffered(1).
        param_resident = param_bytes_raw * (1 if buffer_params_once else 2)
        tile_bytes = 2 * block_b * (k_pad * 2 + d_pad * 2)   # dbl-buffered bf16 in/out
        stage_bytes = block_b * d_stage_max * 4
        live_bytes = 2 * block_b * max([d_pad] + list(stage_dims or [0])) * 4
        need = param_resident + tile_bytes + stage_bytes + live_bytes + (4 << 20)
        try:
            cap = int(pltpu.get_tpu_info().vmem_capacity_bytes)
        except Exception:
            cap = 64 << 20  # v7x-safe default (smallest physical VMEM per TC)
        vmem_limit = int(max(min(need, int(cap * 0.85)), 16 << 20))

        flops = 2 * B_pad * sum(int(w.shape[0]) * int(w.shape[1]) for w in weights)
        bytes_accessed = B_pad * k_pad * 2 + param_bytes_raw + B_pad * d_pad * 2

        return pl.pallas_call(
            functools.partial(_mlp_kernel, n_layers, stage_dims),
            out_shape=jax.ShapeDtypeStruct((B_pad, d_pad), jnp.bfloat16),
            grid=(B_pad // block_b,),
            in_specs=in_specs,
            out_specs=pl.BlockSpec((block_b, d_pad), lambda i: (i, 0)),
            scratch_shapes=scratch,
            compiler_params=pltpu.CompilerParams(
                dimension_semantics=("parallel",),
                vmem_limit_bytes=vmem_limit,
            ),
            cost_estimate=pl.CostEstimate(
                flops=flops, transcendentals=0, bytes_accessed=bytes_accessed),
        )

    try:
        out = build_call(True)(xa, *params)
    except Exception:
        # pipeline_mode=pl.Buffered(1) not supported on this build: fall back
        # to default double-buffered parameter specs (correctness unaffected).
        out = build_call(False)(xa, *params)

    out = out[:B]
    if out_dim is not None and out_dim < d_pad:
        out = out[:, :out_dim]
    return out


def make_mlp_params(key, x_dim, a_dim, hidden_dims):
    """PyTorch nn.Linear-style init (U(-1/sqrt(fan_in), 1/sqrt(fan_in))).

    Returns (kernel_weights, kernel_biases, ref_weights, ref_biases):
      kernel_*: lane-padded to multiples of 128 (K and N); weights bf16 (MXU
                operands), biases f32 (1, d_pad). W0 covers the merged (x, a)
                input, K-padded to 128.
      ref_*   : unpadded; ref weights bf16 so the reference uses the same
                quantized parameters as the kernel.
    """
    in_dim = x_dim + (a_dim if a_dim else 0)
    dims = (in_dim,) + tuple(hidden_dims)

    ref_ws, ref_bs = [], []
    for i in range(len(dims) - 1):
        fan_in, fan_out = dims[i], dims[i + 1]
        key, kw, kb = jax.random.split(key, 3)
        bound = 1.0 / np.sqrt(fan_in)
        w = jax.random.uniform(kw, (fan_in, fan_out), jnp.float32, -bound, bound)
        b = jax.random.uniform(kb, (1, fan_out), jnp.float32, -bound, bound)
        ref_ws.append(w)
        ref_bs.append(b)

    padded = [_round_up(d, LANE) for d in dims]
    kernel_ws, kernel_bs = [], []
    for i, (w, b) in enumerate(zip(ref_ws, ref_bs)):
        fi_pad, fo_pad = padded[i], padded[i + 1]
        w_p = jnp.zeros((fi_pad, fo_pad), jnp.float32)
        w_p = w_p.at[: w.shape[0], : w.shape[1]].set(w)
        b_p = jnp.zeros((1, fo_pad), jnp.float32).at[:, : b.shape[1]].set(b)
        kernel_ws.append(w_p.astype(jnp.bfloat16))
        kernel_bs.append(b_p)

    ref_ws = [w.astype(jnp.bfloat16) for w in ref_ws]
    return kernel_ws, kernel_bs, ref_ws, ref_bs


def mlp_reference(x, a, weights_bf16, biases_f32):
    h = jnp.concatenate([x, a], axis=-1) if a is not None else x
    for w, b in zip(weights_bf16, biases_f32):
        h = jnp.dot(h.astype(jnp.bfloat16), w, preferred_element_type=jnp.float32) + b
        h = jnp.maximum(h, 0.0)
    return h


if __name__ == "__main__":
    # Module defaults: dims=(256, 256), output_relu=True, activation='relu';
    # obs_space.shape=(12,), action_space.shape=(4,). Batch of 256 rows
    # -> block_b=128, a 2-step "parallel" grid (both v7x TCs active).
    # TODO(synk): 'tanh' activation variant and batch_input/device handling
    # from the Torch module are not reimplemented (default relu path only).
    B, x_dim, a_dim = 256, 12, 4
    hidden = (256, 256)

    key = jax.random.PRNGKey(0)
    key, kx, ka, kp = jax.random.split(key, 4)
    x = jax.random.normal(kx, (B, x_dim), jnp.float32)
    a = jax.random.normal(ka, (B, a_dim), jnp.float32)

    k_ws, k_bs, r_ws, r_bs = make_mlp_params(kp, x_dim, a_dim, hidden)

    out = mlp_forward(x, a, k_ws, k_bs, out_dim=hidden[-1])
    out = jax.block_until_ready(out)

    ref = mlp_reference(x, a, r_ws, r_bs)
    np.testing.assert_allclose(np.asarray(out, dtype=np.float32),
                               np.asarray(ref), rtol=2e-2, atol=2e-2)

    assert out.shape == (B, hidden[-1])
    assert out.dtype == jnp.bfloat16
    print("KERNEL_OK")
</pallas_src>

<mosaic_0001>
module attributes {stable_mosaic.version = 11 : i64} {
  func.func @_mlp_kernel(%arg0: i32, %arg1: memref<128x128xbf16, #tpu.memory_space<vmem>>, %arg2: memref<128x256xbf16, #tpu.memory_space<vmem>>, %arg3: memref<1x256xf32, #tpu.memory_space<vmem>>, %arg4: memref<256x256xbf16, #tpu.memory_space<vmem>>, %arg5: memref<1x256xf32, #tpu.memory_space<vmem>>, %arg6: memref<128x256xbf16, #tpu.memory_space<vmem>>, %arg7: memref<128x256xf32, #tpu.memory_space<vmem>>) attributes {dimension_semantics = [#tpu.dimension_semantics<parallel>], iteration_bounds = array<i64: 2>, scalar_prefetch = 0 : i64, scratch_operands = 1 : i64, tpu.core_type = #tpu.core_type<tc>, window_params = [{transform_indices = @transform_0, window_bounds = array<i64: 128, 128>}, {pipeline_mode = #tpu.pipeline_mode<synchronous>, transform_indices = @transform_1, window_bounds = array<i64: 128, 256>}, {pipeline_mode = #tpu.pipeline_mode<synchronous>, transform_indices = @transform_2, window_bounds = array<i64: 1, 256>}, {pipeline_mode = #tpu.pipeline_mode<synchronous>, transform_indices = @transform_3, window_bounds = array<i64: 256, 256>}, {pipeline_mode = #tpu.pipeline_mode<synchronous>, transform_indices = @transform_4, window_bounds = array<i64: 1, 256>}, {transform_indices = @transform_5, window_bounds = array<i64: 128, 256>}]} {
    %c0 = arith.constant 0 : index
    %c0_0 = arith.constant 0 : index
    %0 = vector.load %arg1[%c0, %c0_0] : memref<128x128xbf16, #tpu.memory_space<vmem>>, vector<128x128xbf16>
    %c0_1 = arith.constant 0 : index
    %c0_2 = arith.constant 0 : index
    %1 = vector.load %arg2[%c0_1, %c0_2] : memref<128x256xbf16, #tpu.memory_space<vmem>>, vector<128x256xbf16>
    %cst = arith.constant dense<0.000000e+00> : vector<128x256xf32>
    %2 = tpu.matmul %0, %1, %cst {dimension_numbers = #tpu.dot_dimension_numbers<[1], [0], [0], [1], [0, 0, 1, 1], [], []>} : vector<128x128xbf16>, vector<128x256xbf16>, vector<128x256xf32> -> vector<128x256xf32>
    %c0_3 = arith.constant 0 : index
    %c0_4 = arith.constant 0 : index
    %3 = vector.load %arg3[%c0_3, %c0_4] : memref<1x256xf32, #tpu.memory_space<vmem>>, vector<1x256xf32>
    %4 = vector.broadcast %3 : vector<1x256xf32> to vector<128x256xf32>
    %5 = arith.addf %2, %4 : vector<128x256xf32>
    %cst_5 = arith.constant 0.000000e+00 : f32
    %6 = vector.broadcast %cst_5 : f32 to vector<128x256xf32>
    %7 = arith.maximumf %5, %6 : vector<128x256xf32>
    %c0_6 = arith.constant 0 : index
    %c0_7 = arith.constant 0 : index
    %8 = vector.load %arg7[%c0_6, %c0_7] : memref<128x256xf32, #tpu.memory_space<vmem>>, vector<128x256xf32>
    tpu.vector_store %arg7[%c0_6, %c0_7], %7 {strides = array<i32>} : memref<128x256xf32, #tpu.memory_space<vmem>>, vector<128x256xf32>,
    %c0_8 = arith.constant 0 : index
    %c0_9 = arith.constant 0 : index
    %9 = vector.load %arg7[%c0_8, %c0_9] : memref<128x256xf32, #tpu.memory_space<vmem>>, vector<128x256xf32>
    %10 = arith.truncf %9 : vector<128x256xf32> to vector<128x256xbf16>
    %c0_10 = arith.constant 0 : index
    %c0_11 = arith.constant 0 : index
    %11 = vector.load %arg4[%c0_10, %c0_11] : memref<256x256xbf16, #tpu.memory_space<vmem>>, vector<256x256xbf16>
    %cst_12 = arith.constant dense<0.000000e+00> : vector<128x256xf32>
    %12 = tpu.matmul %10, %11, %cst_12 {dimension_numbers = #tpu.dot_dimension_numbers<[1], [0], [0], [1], [0, 0, 1, 1], [], []>} : vector<128x256xbf16>, vector<256x256xbf16>, vector<128x256xf32> -> vector<128x256xf32>
    %c0_13 = arith.constant 0 : index
    %c0_14 = arith.constant 0 : index
    %13 = vector.load %arg5[%c0_13, %c0_14] : memref<1x256xf32, #tpu.memory_space<vmem>>, vector<1x256xf32>
    %14 = vector.broadcast %13 : vector<1x256xf32> to vector<128x256xf32>
    %15 = arith.addf %12, %14 : vector<128x256xf32>
    %cst_15 = arith.constant 0.000000e+00 : f32
    %16 = vector.broadcast %cst_15 : f32 to vector<128x256xf32>
    %17 = arith.maximumf %15, %16 : vector<128x256xf32>
    %18 = arith.truncf %17 : vector<128x256xf32> to vector<128x256xbf16>
    %c0_16 = arith.constant 0 : index
    %c0_17 = arith.constant 0 : index
    %19 = vector.load %arg6[%c0_16, %c0_17] : memref<128x256xbf16, #tpu.memory_space<vmem>>, vector<128x256xbf16>
    tpu.vector_store %arg6[%c0_16, %c0_17], %18 {strides = array<i32>} : memref<128x256xbf16, #tpu.memory_space<vmem>>, vector<128x256xbf16>,
    return
  }
  func.func @transform_0(%arg0: i32) -> (i32, i32) {
    %c0_i32 = arith.constant 0 : i32
    %c0_i32_0 = arith.constant 0 : i32
    return %arg0, %c0_i32 : i32, i32
  }
  func.func @transform_1(%arg0: i32) -> (i32, i32) {
    %c0_i32 = arith.constant 0 : i32
    %c0_i32_0 = arith.constant 0 : i32
    %c0_i32_1 = arith.constant 0 : i32
    return %c0_i32, %c0_i32_0 : i32, i32
  }
  func.func @transform_2(%arg0: i32) -> (i32, i32) {
    %c0_i32 = arith.constant 0 : i32
    %c0_i32_0 = arith.constant 0 : i32
    %c0_i32_1 = arith.constant 0 : i32
    return %c0_i32, %c0_i32_0 : i32, i32
  }
  func.func @transform_3(%arg0: i32) -> (i32, i32) {
    %c0_i32 = arith.constant 0 : i32
    %c0_i32_0 = arith.constant 0 : i32
    %c0_i32_1 = arith.constant 0 : i32
    return %c0_i32, %c0_i32_0 : i32, i32
  }
  func.func @transform_4(%arg0: i32) -> (i32, i32) {
    %c0_i32 = arith.constant 0 : i32
    %c0_i32_0 = arith.constant 0 : i32
    %c0_i32_1 = arith.constant 0 : i32
    return %c0_i32, %c0_i32_0 : i32, i32
  }
  func.func @transform_5(%arg0: i32) -> (i32, i32) {
    %c0_i32 = arith.constant 0 : i32
    %c0_i32_0 = arith.constant 0 : i32
    return %arg0, %c0_i32 : i32, i32
  }
}

module attributes {stable_mosaic.version = 11 : i64} {
  func.func @_mlp_kernel(%arg0: i32, %arg1: memref<128x128xbf16, #tpu.memory_space<vmem>>, %arg2: memref<128x256xbf16, #tpu.memory_space<vmem>>, %arg3: memref<1x256xf32, #tpu.memory_space<vmem>>, %arg4: memref<256x256xbf16, #tpu.memory_space<vmem>>, %arg5: memref<1x256xf32, #tpu.memory_space<vmem>>, %arg6: memref<128x256xbf16, #tpu.memory_space<vmem>>, %arg7: memref<128x256xf32, #tpu.memory_space<vmem>>) attributes {dimension_semantics = [#tpu.dimension_semantics<parallel>], iteration_bounds = array<i64: 2>, scalar_prefetch = 0 : i64, scratch_operands = 1 : i64, tpu.core_type = #tpu.core_type<tc>, window_params = [{transform_indices = @transform_0, window_bounds = array<i64: 128, 128>}, {pipeline_mode = #tpu.pipeline_mode<synchronous>, transform_indices = @transform_1, window_bounds = array<i64: 128, 256>}, {pipeline_mode = #tpu.pipeline_mode<synchronous>, transform_indices = @transform_2, window_bounds = array<i64: 1, 256>}, {pipeline_mode = #tpu.pipeline_mode<synchronous>, transform_indices = @transform_3, window_bounds = array<i64: 256, 256>}, {pipeline_mode = #tpu.pipeline_mode<synchronous>, transform_indices = @transform_4, window_bounds = array<i64: 1, 256>}, {transform_indices = @transform_5, window_bounds = array<i64: 128, 256>}]} {
    %c0 = arith.constant 0 : index
    %c0_0 = arith.constant 0 : index
    %0 = vector.load %arg1[%c0, %c0_0] : memref<128x128xbf16, #tpu.memory_space<vmem>>, vector<128x128xbf16>
    %c0_1 = arith.constant 0 : index
    %c0_2 = arith.constant 0 : index
    %1 = vector.load %arg2[%c0_1, %c0_2] : memref<128x256xbf16, #tpu.memory_space<vmem>>, vector<128x256xbf16>
    %cst = arith.constant dense<0.000000e+00> : vector<128x256xf32>
    %2 = tpu.matmul %0, %1, %cst {dimension_numbers = #tpu.dot_dimension_numbers<[1], [0], [0], [1], [0, 0, 1, 1], [], []>} : vector<128x128xbf16>, vector<128x256xbf16>, vector<128x256xf32> -> vector<128x256xf32>
    %c0_3 = arith.constant 0 : index
    %c0_4 = arith.constant 0 : index
    %3 = vector.load %arg3[%c0_3, %c0_4] : memref<1x256xf32, #tpu.memory_space<vmem>>, vector<1x256xf32>
    %4 = vector.broadcast %3 : vector<1x256xf32> to vector<128x256xf32>
    %5 = arith.addf %2, %4 : vector<128x256xf32>
    %cst_5 = arith.constant 0.000000e+00 : f32
    %6 = vector.broadcast %cst_5 : f32 to vector<128x256xf32>
    %7 = arith.maximumf %5, %6 : vector<128x256xf32>
    %c0_6 = arith.constant 0 : index
    %c0_7 = arith.constant 0 : index
    %8 = vector.load %arg7[%c0_6, %c0_7] : memref<128x256xf32, #tpu.memory_space<vmem>>, vector<128x256xf32>
    tpu.vector_store %arg7[%c0_6, %c0_7], %7 {strides = array<i32>} : memref<128x256xf32, #tpu.memory_space<vmem>>, vector<128x256xf32>,
    %c0_8 = arith.constant 0 : index
    %c0_9 = arith.constant 0 : index
    %9 = vector.load %arg7[%c0_8, %c0_9] : memref<128x256xf32, #tpu.memory_space<vmem>>, vector<128x256xf32>
    %10 = arith.truncf %9 : vector<128x256xf32> to vector<128x256xbf16>
    %c0_10 = arith.constant 0 : index
    %c0_11 = arith.constant 0 : index
    %11 = vector.load %arg4[%c0_10, %c0_11] : memref<256x256xbf16, #tpu.memory_space<vmem>>, vector<256x256xbf16>
    %cst_12 = arith.constant dense<0.000000e+00> : vector<128x256xf32>
    %12 = tpu.matmul %10, %11, %cst_12 {dimension_numbers = #tpu.dot_dimension_numbers<[1], [0], [0], [1], [0, 0, 1, 1], [], []>} : vector<128x256xbf16>, vector<256x256xbf16>, vector<128x256xf32> -> vector<128x256xf32>
    %c0_13 = arith.constant 0 : index
    %c0_14 = arith.constant 0 : index
    %13 = vector.load %arg5[%c0_13, %c0_14] : memref<1x256xf32, #tpu.memory_space<vmem>>, vector<1x256xf32>
    %14 = vector.broadcast %13 : vector<1x256xf32> to vector<128x256xf32>
    %15 = arith.addf %12, %14 : vector<128x256xf32>
    %cst_15 = arith.constant 0.000000e+00 : f32
    %16 = vector.broadcast %cst_15 : f32 to vector<128x256xf32>
    %17 = arith.maximumf %15, %16 : vector<128x256xf32>
    %18 = arith.truncf %17 : vector<128x256xf32> to vector<128x256xbf16>
    %c0_16 = arith.constant 0 : index
    %c0_17 = arith.constant 0 : index
    %19 = vector.load %arg6[%c0_16, %c0_17] : memref<128x256xbf16, #tpu.memory_space<vmem>>, vector<128x256xbf16>
    tpu.vector_store %arg6[%c0_16, %c0_17], %18 {strides = array<i32>} : memref<128x256xbf16, #tpu.memory_space<vmem>>, vector<128x256xbf16>,
    return
  }
  func.func @transform_0(%arg0: i32) -> (i32, i32) {
    %c0_i32 = arith.constant 0 : i32
    %c0_i32_0 = arith.constant 0 : i32
    return %arg0, %c0_i32 : i32, i32
  }
  func.func @transform_1(%arg0: i32) -> (i32, i32) {
    %c0_i32 = arith.constant 0 : i32
    %c0_i32_0 = arith.constant 0 : i32
    %c0_i32_1 = arith.constant 0 : i32
    return %c0_i32, %c0_i32_0 : i32, i32
  }
  func.func @transform_2(%arg0: i32) -> (i32, i32) {
    %c0_i32 = arith.constant 0 : i32
    %c0_i32_0 = arith.constant 0 : i32
    %c0_i32_1 = arith.constant 0 : i32
    return %c0_i32, %c0_i32_0 : i32, i32
  }
  func.func @transform_3(%arg0: i32) -> (i32, i32) {
    %c0_i32 = arith.constant 0 : i32
    %c0_i32_0 = arith.constant 0 : i32
    %c0_i32_1 = arith.constant 0 : i32
    return %c0_i32, %c0_i32_0 : i32, i32
  }
  func.func @transform_4(%arg0: i32) -> (i32, i32) {
    %c0_i32 = arith.constant 0 : i32
    %c0_i32_0 = arith.constant 0 : i32
    %c0_i32_1 = arith.constant 0 : i32
    return %c0_i32, %c0_i32_0 : i32, i32
  }
  func.func @transform_5(%arg0: i32) -> (i32, i32) {
    %c0_i32 = arith.constant 0 : i32
    %c0_i32_0 = arith.constant 0 : i32
    return %arg0, %c0_i32 : i32, i32
  }
}

</mosaic_0001>

<llo_original>
// kernel: tpu_custom_call.1
$region0: #{tpu_custom_call.1}
  #allocation0 [shape = 'u32[]', space=smem, size = 0x4, offset = 0x4, fixed_abs, tag = 'smem constant byte address 0x4 - core index']
  #allocation1 [shape = 'u32[144,128]{1,0:T(1,128)}', space=vmem, size = 0x12000, scoped, tag = 'internal scratch']
  #allocation2 [shape = 'f32[128,256]{1,0:T(8,128)}', space=vmem, size = 0x20000, scoped, tag = 'scratch operand']
  %s0 = inlined_call_operand.hbm [shape: bf16[256,128], index: 0, kind: input, shape index: {}]
  %s1 = inlined_call_operand.hbm [shape: bf16[128,256], index: 1, kind: input, shape index: {}]
  %s2 = inlined_call_operand.vmem [shape: f32[1,256], index: 2, kind: input, shape index: {}]
  %s3 = inlined_call_operand.hbm [shape: bf16[256,256], index: 3, kind: input, shape index: {}]
  %s4 = inlined_call_operand.vmem [shape: f32[1,256], index: 4, kind: input, shape index: {}]
  %s5 = inlined_call_operand.hbm [shape: bf16[256,256], index: 5, kind: output, shape index: {}]
  %s6 = sld [smem:[#allocation0]]
  $region65: #{tpu_custom_call.1} parent=0
    _
  %s8 = ssub.s32 1, %s6
  %s9 = scalar_select 0, %s8, %s6
  $region1: #{tpu_custom_call.1} parent=0
    #allocation3 [shape = 'u8[65536]{0}', space=vmem, size = 0x10000, scoped, tag = 'input window, operand 0']
    #allocation4 [shape = 's32[2]{0}', space=sflag, size = 0x8, scoped, tag = 'scoped memory for tpu_custom_call.1']
    #allocation5 [shape = 's32[2]{0}', space=sflag, size = 0x8, scoped, tag = 'scoped memory for tpu_custom_call.1']
    #allocation6 [shape = 'u8[65536]{0}', space=vmem, size = 0x10000, scoped, tag = 'input window, operand 1, single buffered']
    #allocation7 [shape = 's32[1]{0}', space=sflag, size = 0x4, scoped, tag = 'scoped memory for tpu_custom_call.1']
    #allocation8 [shape = 'u8[131072]{0}', space=vmem, size = 0x20000, scoped, tag = 'input window, operand 3, single buffered']
    #allocation9 [shape = 'u8[131072]{0}', space=vmem, size = 0x20000, scoped, tag = 'output window, operand 0']
    %10 = vsyncpa [#allocation4], 0
    %s11 = scalar_lea.sflag [#allocation4], 1
    %12 = vsyncpa %s11, 0
    %13 = vsyncpa [#allocation7], 0
    %14 = vsyncpa [#allocation5], 0
    %s15 = scalar_lea.sflag [#allocation5], 1
    %16 = vsyncpa %s15, 0
    loop: start=0, step=1, limit=4
    $region2: #{tpu_custom_call.1} parent=1 // loop_pre_header
      _
    $region3: #{tpu_custom_call.1} parent=1 // loop_header
      %s18 = sphi 0, %s22
      %p19 = scmp.ge.s32.totalorder %s18, 4
      %s28 = sphi 0, %s30
      %s31 = sphi 0, %s28
      %s32 = sphi 0, %s31
      %s48 = sphi 0, %s32
      %s52 = sphi 0, %s52
      %s54 = sphi 0, %s52
      %s55 = sphi 0, %s54
      %s69 = sphi 0, %s55
      %s73 = sphi 0, %s73
      %s75 = sphi 0, %s73
      %s76 = sphi 0, %s75
      %s90 = sphi 0, %s76
      %s94 = sphi 0, %s94
      %s96 = sphi 0, %s94
      %s97 = sphi 0, %s96
      %s111 = sphi 0, %s97
      %s115 = sphi 0, %s115
      %s117 = sphi 0, %s115
      %s118 = sphi 0, %s117
      %s132 = sphi 0, %s118
      %s138 = sphi 0, %s140
      %s141 = sphi 0, %s138
      %s142 = sphi 0, %s141
      %s158 = sphi 0, %s142
    $region4: #{tpu_custom_call.1} parent=1 // loop_header_branch
      %21 = sbr.rel (%p19) target = $region8
    $region5: #{tpu_custom_call.1} parent=1 // loop_body
      %s23 = ssub.s32 %s18, 1
      %s24 = ssub.s32 %s18, 2
      %s25 = sadd.s32 %s18, 1
      %s26 = ssub.s32 %s18, %s25
      %p27 = scmp.eq.s32.totalorder %s26, 0
      %s29 = sadd.s32 %s28, 1
      %s30 = scalar_select %p27, %s28, %s29
      %p33 = pneg %p27
      %p34 = scmp.eq.s32.totalorder %s18, 1
      %p35 = por %p33, %p34
      %p36 = scmp.ne.s32.totalorder %s28, %s31
      %p37 = scmp.eq.s32.totalorder %s18, 0
      %p38 = por %p36, %p37
      %p39 = scmp.ne.s32.totalorder %s28, %s31
      %p40 = scmp.eq.s32.totalorder %s23, 1
      %p41 = por %p39, %p40
      %p42 = scmp.ne.s32.totalorder %s31, %s32
      %p43 = scmp.eq.s32.totalorder %s23, 0
      %p44 = por %p42, %p43
      %p45 = scmp.ne.s32.totalorder %s31, %s32
      %p46 = scmp.eq.s32.totalorder %s24, 1
      %p47 = por %p45, %p46
      %p49 = scmp.ne.s32.totalorder %s32, %s48
      %p50 = scmp.eq.s32.totalorder %s24, 0
      %p51 = por %p49, %p50
      %s53 = sadd.s32 %s52, 1
      %p56 = scmp.eq.s32.totalorder %s18, 1
      %p57 = scmp.ne.s32.totalorder %s52, %s54
      %p58 = scmp.eq.s32.totalorder %s18, 0
      %p59 = por %p57, %p58
      %p60 = scmp.ne.s32.totalorder %s52, %s54
      %p61 = scmp.eq.s32.totalorder %s23, 1
      %p62 = por %p60, %p61
      %p63 = scmp.ne.s32.totalorder %s54, %s55
      %p64 = scmp.eq.s32.totalorder %s23, 0
      %p65 = por %p63, %p64
      %p66 = scmp.ne.s32.totalorder %s54, %s55
      %p67 = scmp.eq.s32.totalorder %s24, 1
      %p68 = por %p66, %p67
      %p70 = scmp.ne.s32.totalorder %s55, %s69
      %p71 = scmp.eq.s32.totalorder %s24, 0
      %p72 = por %p70, %p71
      %s74 = sadd.s32 %s73, 1
      %p77 = scmp.eq.s32.totalorder %s18, 1
      %p78 = scmp.ne.s32.totalorder %s73, %s75
      %p79 = scmp.eq.s32.totalorder %s18, 0
      %p80 = por %p78, %p79
      %p81 = scmp.ne.s32.totalorder %s73, %s75
      %p82 = scmp.eq.s32.totalorder %s23, 1
      %p83 = por %p81, %p82
      %p84 = scmp.ne.s32.totalorder %s75, %s76
      %p85 = scmp.eq.s32.totalorder %s23, 0
      %p86 = por %p84, %p85
      %p87 = scmp.ne.s32.totalorder %s75, %s76
      %p88 = scmp.eq.s32.totalorder %s24, 1
      %p89 = por %p87, %p88
      %p91 = scmp.ne.s32.totalorder %s76, %s90
      %p92 = scmp.eq.s32.totalorder %s24, 0
      %p93 = por %p91, %p92
      %s95 = sadd.s32 %s94, 1
      %p98 = scmp.eq.s32.totalorder %s18, 1
      %p99 = scmp.ne.s32.totalorder %s94, %s96
      %p100 = scmp.eq.s32.totalorder %s18, 0
      %p101 = por %p99, %p100
      %p102 = scmp.ne.s32.totalorder %s94, %s96
      %p103 = scmp.eq.s32.totalorder %s23, 1
      %p104 = por %p102, %p103
      %p105 = scmp.ne.s32.totalorder %s96, %s97
      %p106 = scmp.eq.s32.totalorder %s23, 0
      %p107 = por %p105, %p106
      %p108 = scmp.ne.s32.totalorder %s96, %s97
      %p109 = scmp.eq.s32.totalorder %s24, 1
      %p110 = por %p108, %p109
      %p112 = scmp.ne.s32.totalorder %s97, %s111
      %p113 = scmp.eq.s32.totalorder %s24, 0
      %p114 = por %p112, %p113
      %s116 = sadd.s32 %s115, 1
      %p119 = scmp.eq.s32.totalorder %s18, 1
      %p120 = scmp.ne.s32.totalorder %s115, %s117
      %p121 = scmp.eq.s32.totalorder %s18, 0
      %p122 = por %p120, %p121
      %p123 = scmp.ne.s32.totalorder %s115, %s117
      %p124 = scmp.eq.s32.totalorder %s23, 1
      %p125 = por %p123, %p124
      %p126 = scmp.ne.s32.totalorder %s117, %s118
      %p127 = scmp.eq.s32.totalorder %s23, 0
      %p128 = por %p126, %p127
      %p129 = scmp.ne.s32.totalorder %s117, %s118
      %p130 = scmp.eq.s32.totalorder %s24, 1
      %p131 = por %p129, %p130
      %p133 = scmp.ne.s32.totalorder %s118, %s132
      %p134 = scmp.eq.s32.totalorder %s24, 0
      %p135 = por %p133, %p134
      %s136 = ssub.s32 %s18, %s25
      %p137 = scmp.eq.s32.totalorder %s136, 0
      %s139 = sadd.s32 %s138, 1
      %s140 = scalar_select %p137, %s138, %s139
      %p143 = pneg %p137
      %p144 = scmp.eq.s32.totalorder %s18, 1
      %p145 = por %p143, %p144
      %p146 = scmp.ne.s32.totalorder %s138, %s141
      %p147 = scmp.eq.s32.totalorder %s18, 0
      %p148 = por %p146, %p147
      %p149 = scmp.ne.s32.totalorder %s138, %s141
      %p150 = scmp.eq.s32.totalorder %s23, 1
      %p151 = por %p149, %p150
      %p152 = scmp.ne.s32.totalorder %s141, %s142
      %p153 = scmp.eq.s32.totalorder %s23, 0
      %p154 = por %p152, %p153
      %p155 = scmp.ne.s32.totalorder %s141, %s142
      %p156 = scmp.eq.s32.totalorder %s24, 1
      %p157 = por %p155, %p156
      %p159 = scmp.ne.s32.totalorder %s142, %s158
      %p160 = scmp.eq.s32.totalorder %s24, 0
      %p161 = por %p159, %p160
      %p162 = scmp.le.s32.totalorder 1, %s18
      %p163 = scmp.lt.s32.totalorder %s18, 3
      %p164 = pnand %p162, %p163
      %p165 = pneg %p164
      // Predicated region
      $region9: #{tpu_custom_call.1} parent=5 // pred_check
        _
      $region10: #{tpu_custom_call.1} parent=5 // pred_check_branch
        %167 = sbr.rel (%p164) target = $region12
      $region11: #{tpu_custom_call.1} parent=5 // pred_region
        %s168 = ssub.s32 %s18, 1
        // Predicated region
        $region13: #{tpu_custom_call.1} parent=11 // pred_check
          %p169 = pneg %p65
        $region14: #{tpu_custom_call.1} parent=11 // pred_check_branch
          %171 = sbr.rel (%p169) target = $region16
        $region15: #{tpu_custom_call.1} parent=11 // pred_region
          %s173 = ssub.s32 2048, 2048
          %174 = vsyncadd [#allocation7], %s173
          %s175 = sshll.u32 [#allocation6], 4
          %s176 = int_to_ptr.vmem [resolvable:$true] %s175
          %181 = dma.hbm_to_vmem [thread:$0]  %s1, 2048, %s176, [#allocation7], 128, 128, 8
        $region16: #{tpu_custom_call.1} parent=11 // pred_fallthru
          _
        // Predicated region
        $region17: #{tpu_custom_call.1} parent=11 // pred_check
          %p182 = pneg %p86
        $region18: #{tpu_custom_call.1} parent=11 // pred_check_branch
          %184 = sbr.rel (%p182) target = $region20
        $region19: #{tpu_custom_call.1} parent=11 // pred_region
          _
        $region20: #{tpu_custom_call.1} parent=11 // pred_fallthru
          _
        // Predicated region
        $region21: #{tpu_custom_call.1} parent=11 // pred_check
          %p185 = pneg %p107
        $region22: #{tpu_custom_call.1} parent=11 // pred_check_branch
          %187 = sbr.rel (%p185) target = $region24
        $region23: #{tpu_custom_call.1} parent=11 // pred_region
          %s189 = ssub.s32 4096, 4096
          %190 = vsyncadd [#allocation7], %s189
          %s191 = sshll.u32 [#allocation8], 4
          %s192 = int_to_ptr.vmem [resolvable:$true] %s191
          %197 = dma.hbm_to_vmem [thread:$0]  %s3, 4096, %s192, [#allocation7], 128, 128, 8
        $region24: #{tpu_custom_call.1} parent=11 // pred_fallthru
          _
        // Predicated region
        $region25: #{tpu_custom_call.1} parent=11 // pred_check
          %p198 = pneg %p128
        $region26: #{tpu_custom_call.1} parent=11 // pred_check_branch
          %200 = sbr.rel (%p198) target = $region28
        $region27: #{tpu_custom_call.1} parent=11 // pred_region
          _
        $region28: #{tpu_custom_call.1} parent=11 // pred_fallthru
          _
      $region12: #{tpu_custom_call.1} parent=5 // pred_fallthru
        _
      %p201 = scmp.lt.s32.totalorder %s18, 2
      // Predicated region
      $region29: #{tpu_custom_call.1} parent=5 // pred_check
        %p202 = pneg %p201
      $region30: #{tpu_custom_call.1} parent=5 // pred_check_branch
        %204 = sbr.rel (%p202) target = $region32
      $region31: #{tpu_custom_call.1} parent=5 // pred_region
        // Predicated region
        $region33: #{tpu_custom_call.1} parent=31 // pred_check
          %p205 = pneg %p38
        $region34: #{tpu_custom_call.1} parent=31 // pred_check_branch
          %207 = sbr.rel (%p205) target = $region36
        $region35: #{tpu_custom_call.1} parent=31 // pred_region
          %s208 = sand.u32 %s28, 1
          %s209 = scalar_lea.sflag [#allocation4], %s208
          %s210 = sand.u32 %s28, 1
          %s211 = smul.addr %s210, 64
          %s212 = scalar_lea.vmem [#allocation3], %s211
          %s213 = smul.u32 16, %s18
          %s215 = ssub.s32 1024, 1024
          %216 = vsyncadd %s209, %s215
          %s217 = smul.addr %s213, 64
          %s218 = scalar_lea.hbm %s0, %s217
          %s219 = sshll.u32 %s212, 4
          %s220 = int_to_ptr.vmem [resolvable:$true] %s219
          %225 = dma.hbm_to_vmem [thread:$0]  %s218, 1024, %s220, %s209, 64, 64, 4
        $region36: #{tpu_custom_call.1} parent=31 // pred_fallthru
          _
      $region32: #{tpu_custom_call.1} parent=5 // pred_fallthru
        _
      %p226 = scmp.le.s32.totalorder 1, %s18
      %p227 = scmp.lt.s32.totalorder %s18, 3
      %p228 = pnand %p226, %p227
      %p229 = pneg %p228
      // Predicated region
      $region37: #{tpu_custom_call.1} parent=5 // pred_check
        _
      $region38: #{tpu_custom_call.1} parent=5 // pred_check_branch
        %231 = sbr.rel (%p228) target = $region40
      $region39: #{tpu_custom_call.1} parent=5 // pred_region
        %s232 = ssub.s32 %s18, 1
        %s233 = sand.u32 %s31, 1
        %s234 = scalar_lea.sflag [#allocation4], %s233
        %s235 = sand.u32 %s31, 1
        %s236 = smul.addr %s235, 64
        %s237 = scalar_lea.vmem [#allocation3], %s236
        // Predicated region
        $region41: #{tpu_custom_call.1} parent=39 // pred_check
          %p238 = pneg %p44
        $region42: #{tpu_custom_call.1} parent=39 // pred_check_branch
          %240 = sbr.rel (%p238) target = $region44
        $region43: #{tpu_custom_call.1} parent=39 // pred_region
          %241 = dma.done %s234, 1024
        $region44: #{tpu_custom_call.1} parent=39 // pred_fallthru
          _
        // Predicated region
        $region45: #{tpu_custom_call.1} parent=39 // pred_check
          %p242 = pneg %p65
        $region46: #{tpu_custom_call.1} parent=39 // pred_check_branch
          %244 = sbr.rel (%p242) target = $region48
        $region47: #{tpu_custom_call.1} parent=39 // pred_region
          %245 = dma.done [#allocation7], 2048
        $region48: #{tpu_custom_call.1} parent=39 // pred_fallthru
          _
        // Predicated region
        $region49: #{tpu_custom_call.1} parent=39 // pred_check
          %p246 = pneg %p107
        $region50: #{tpu_custom_call.1} parent=39 // pred_check_branch
          %248 = sbr.rel (%p246) target = $region52
        $region51: #{tpu_custom_call.1} parent=39 // pred_region
          %249 = dma.done [#allocation7], 4096
        $region52: #{tpu_custom_call.1} parent=39 // pred_fallthru
          _
        %s250 = sand.u32 %s31, 1
        %s251 = scalar_lea.sflag [#allocation4], %s250
        %s252 = sand.u32 %s31, 1
        %s253 = smul.addr %s252, 64
        %s254 = scalar_lea.vmem [#allocation3], %s253
        %p255 = pneg %p44
        %p256 = pneg %p41
        %p257 = pneg %p65
        %p258 = pneg %p62
        %p259 = pneg %p86
        %p260 = pneg %p83
        %p261 = pneg %p107
        %p262 = pneg %p104
        %p263 = pneg %p128
        %p264 = pneg %p125
        %p265 = pneg %p154
        %p266 = pneg %p151
        %s267 = sand.u32 %s141, 1
        %s268 = scalar_lea.sflag [#allocation5], %s267
        %s269 = sand.u32 %s141, 1
        %s270 = smul.addr %s269, 128
        %s271 = scalar_lea.vmem [#allocation9], %s270
        %s272 = smul.u32 16, %s23
        %s273 = smul.u32 16, %s23
        %v275 = vld [vmem:[%s237] sm:$0xf]
        %v276 = vld [vmem:[%s237 + $0x4] sm:$0xf]
        %v277 = vld [vmem:[%s237 + $0x8] sm:$0xf]
        %v278 = vld [vmem:[%s237 + $0xc] sm:$0xf]
        %v279 = vld [vmem:[%s237 + $0x10] sm:$0xf]
        %v280 = vld [vmem:[%s237 + $0x14] sm:$0xf]
        %v281 = vld [vmem:[%s237 + $0x18] sm:$0xf]
        %v282 = vld [vmem:[%s237 + $0x1c] sm:$0xf]
        %v283 = vld [vmem:[%s237 + $0x20] sm:$0xf]
        %v284 = vld [vmem:[%s237 + $0x24] sm:$0xf]
        %v285 = vld [vmem:[%s237 + $0x28] sm:$0xf]
        %v286 = vld [vmem:[%s237 + $0x2c] sm:$0xf]
        %v287 = vld [vmem:[%s237 + $0x30] sm:$0xf]
        %v288 = vld [vmem:[%s237 + $0x34] sm:$0xf]
        %v289 = vld [vmem:[%s237 + $0x38] sm:$0xf]
        %v290 = vld [vmem:[%s237 + $0x3c] sm:$0xf]
        %v291 = vld [vmem:[#allocation6] sm:$0xff]
        %v292 = vld [vmem:[#allocation6 + $0x8] sm:$0xff]
        %v293 = vld [vmem:[#allocation6 + $0x10] sm:$0xff]
        %v294 = vld [vmem:[#allocation6 + $0x18] sm:$0xff]
        %v295 = vld [vmem:[#allocation6 + $0x20] sm:$0xff]
        %v296 = vld [vmem:[#allocation6 + $0x28] sm:$0xff]
        %v297 = vld [vmem:[#allocation6 + $0x30] sm:$0xff]
        %v298 = vld [vmem:[#allocation6 + $0x38] sm:$0xff]
        %v299 = vld [vmem:[#allocation6 + $0x40] sm:$0xff]
        %v300 = vld [vmem:[#allocation6 + $0x48] sm:$0xff]
        %v301 = vld [vmem:[#allocation6 + $0x50] sm:$0xff]
        %v302 = vld [vmem:[#allocation6 + $0x58] sm:$0xff]
        %v303 = vld [vmem:[#allocation6 + $0x60] sm:$0xff]
        %v304 = vld [vmem:[#allocation6 + $0x68] sm:$0xff]
        %v305 = vld [vmem:[#allocation6 + $0x70] sm:$0xff]
        %v306 = vld [vmem:[#allocation6 + $0x78] sm:$0xff]
        %v307 = vld [vmem:[%s2] sm:$0x3]
        %v309 = vlaneseq
        %v310 = vshrl.u32 %v309, 7
        %v311 = vsub.s32 0, %v310
        %v312 = vrot.slane %v307, %v311
        %v313 = vlaneseq
        %v314 = vshrl.u32 %v313, 7
        %v315 = vsub.s32 1, %v314
        %v316 = vrot.slane %v307, %v315
        %v335 = vunpack.c.l.b16 %v275
        %v336 = vunpack.c.l.b16 %v276
        %v337 = vunpack.c.l.b16 %v277
        %v338 = vunpack.c.l.b16 %v278
        %v339 = vunpack.c.l.b16 %v279
        %v340 = vunpack.c.l.b16 %v280
        %v341 = vunpack.c.l.b16 %v281
        %v342 = vunpack.c.l.b16 %v282
        %v343 = vunpack.c.l.b16 %v283
        %v344 = vunpack.c.l.b16 %v284
        %v345 = vunpack.c.l.b16 %v285
        %v346 = vunpack.c.l.b16 %v286
        %v347 = vunpack.c.l.b16 %v287
        %v348 = vunpack.c.l.b16 %v288
        %v349 = vunpack.c.l.b16 %v289
        %v350 = vunpack.c.l.b16 %v290
        %v351 = vpack.c.b16 %v336, %v335
        %v352 = vpack.c.b16 %v338, %v337
        %v353 = vpack.c.b16 %v340, %v339
        %v354 = vpack.c.b16 %v342, %v341
        %v355 = vpack.c.b16 %v344, %v343
        %v356 = vpack.c.b16 %v346, %v345
        %v357 = vpack.c.b16 %v348, %v347
        %v358 = vpack.c.b16 %v350, %v349
        %v383 = vunpack.c.l.b16 %v291
        %v384 = vunpack.c.h.b16 %v291
        %v385 = vunpack.c.l.b16 %v292
        %v386 = vunpack.c.h.b16 %v292
        %v387 = vunpack.c.l.b16 %v293
        %v388 = vunpack.c.h.b16 %v293
        %v389 = vunpack.c.l.b16 %v294
        %v390 = vunpack.c.h.b16 %v294
        %v391 = vunpack.c.l.b16 %v295
        %v392 = vunpack.c.h.b16 %v295
        %v393 = vunpack.c.l.b16 %v296
        %v394 = vunpack.c.h.b16 %v296
        %v395 = vunpack.c.l.b16 %v297
        %v396 = vunpack.c.h.b16 %v297
        %v397 = vunpack.c.l.b16 %v298
        %v398 = vunpack.c.h.b16 %v298
        %v399 = vunpack.c.l.b16 %v299
        %v400 = vunpack.c.h.b16 %v299
        %v401 = vunpack.c.l.b16 %v300
        %v402 = vunpack.c.h.b16 %v300
        %v403 = vunpack.c.l.b16 %v301
        %v404 = vunpack.c.h.b16 %v301
        %v405 = vunpack.c.l.b16 %v302
        %v406 = vunpack.c.h.b16 %v302
        %v407 = vunpack.c.l.b16 %v303
        %v408 = vunpack.c.h.b16 %v303
        %v409 = vunpack.c.l.b16 %v304
        %v410 = vunpack.c.h.b16 %v304
        %v411 = vunpack.c.l.b16 %v305
        %v412 = vunpack.c.h.b16 %v305
        %v413 = vunpack.c.l.b16 %v306
        %v414 = vunpack.c.h.b16 %v306
        %v415 = vpack.c.b16 %v385, %v383
        %v416 = vpack.c.b16 %v386, %v384
        %v417 = vpack.c.b16 %v389, %v387
        %v418 = vpack.c.b16 %v390, %v388
        %v419 = vpack.c.b16 %v393, %v391
        %v420 = vpack.c.b16 %v394, %v392
        %v421 = vpack.c.b16 %v397, %v395
        %v422 = vpack.c.b16 %v398, %v396
        %v423 = vpack.c.b16 %v401, %v399
        %v424 = vpack.c.b16 %v402, %v400
        %v425 = vpack.c.b16 %v405, %v403
        %v426 = vpack.c.b16 %v406, %v404
        %v427 = vpack.c.b16 %v409, %v407
        %v428 = vpack.c.b16 %v410, %v408
        %v429 = vpack.c.b16 %v413, %v411
        %v430 = vpack.c.b16 %v414, %v412
        %447 = vmatprep.subr.bf16.mxu0 %v430
        %448 = vmatpush1.bf16.msra.mxu0 %v429
        %449 = vmatprep.subr.bf16.mxu0 %v428
        %450 = vmatpush1.bf16.msra.mxu0 %v427
        %451 = vmatprep.subr.bf16.mxu0 %v426
        %452 = vmatpush1.bf16.msra.mxu0 %v425
        %453 = vmatprep.subr.bf16.mxu0 %v424
        %454 = vmatpush1.bf16.msra.mxu0 %v423
        %455 = vmatprep.subr.bf16.mxu0 %v422
        %456 = vmatpush1.bf16.msra.mxu0 %v421
        %457 = vmatprep.subr.bf16.mxu0 %v420
        %458 = vmatpush1.bf16.msra.mxu0 %v419
        %459 = vmatprep.subr.bf16.mxu0 %v418
        %460 = vmatpush1.bf16.msra.mxu0 %v417
        %461 = vmatprep.subr.bf16.mxu0 %v416
        %462 = vmatpush1.bf16.msra.mxu0 %v415
        %463 = vmatprep.subr.bf16.mxu0 0
        %464 = vmatpush2.bf16.msra.mxu0 0
        %465 = vmatprep.subr.bf16.mxu0 0
        %466 = vmatpush2.bf16.msra.mxu0 0
        %467 = vmatprep.subr.bf16.mxu0 0
        %468 = vmatpush2.bf16.msra.mxu0 0
        %469 = vmatprep.subr.bf16.mxu0 0
        %470 = vmatpush2.bf16.msra.mxu0 0
        %471 = vmatprep.subr.bf16.mxu0 0
        %472 = vmatpush2.bf16.msra.mxu0 0
        %473 = vmatprep.subr.bf16.mxu0 0
        %474 = vmatpush2.bf16.msra.mxu0 0
        %475 = vmatprep.subr.bf16.mxu0 0
        %476 = vmatpush2.bf16.msra.mxu0 0
        %477 = vmatprep.subr.bf16.mxu0 0
        %478 = vmatpush2.bf16.msra.mxu0 0
        %479 = vmatprep.mubr.bf16.mxu0 0
        %480 = vmatmul.mubr.bf16.gmra.mxu0 %v351
        %v481 = vpop.f32.mrf.mxu0
        %v482 = vadd.f32 %v312, %v481
        %v483 = vpop.f32.mrf.mxu0
        %v484 = vadd.f32 %v316, %v483
        %v485 = vpop.f32.mrf.mxu0
        %v486 = vadd.f32 %v312, %v485
        %v487 = vpop.f32.mrf.mxu0
        %v488 = vadd.f32 %v316, %v487
        %489 = vmatprep.mubr.bf16.mxu0 0
        %490 = vmatmul.mubr.bf16.gmra.mxu0 %v352
        %v491 = vpop.f32.mrf.mxu0
        %v492 = vadd.f32 %v312, %v491
        %v493 = vpop.f32.mrf.mxu0
        %v494 = vadd.f32 %v316, %v493
        %v495 = vpop.f32.mrf.mxu0
        %v496 = vadd.f32 %v312, %v495
        %v497 = vpop.f32.mrf.mxu0
        %v498 = vadd.f32 %v316, %v497
        %499 = vmatprep.mubr.bf16.mxu0 0
        %500 = vmatmul.mubr.bf16.gmra.mxu0 %v353
        %v501 = vpop.f32.mrf.mxu0
        %v502 = vadd.f32 %v312, %v501
        %v503 = vpop.f32.mrf.mxu0
        %v504 = vadd.f32 %v316, %v503
        %v505 = vpop.f32.mrf.mxu0
        %v506 = vadd.f32 %v312, %v505
        %v507 = vpop.f32.mrf.mxu0
        %v508 = vadd.f32 %v316, %v507
        %509 = vmatprep.mubr.bf16.mxu0 0
        %510 = vmatmul.mubr.bf16.gmra.mxu0 %v354
        %v511 = vpop.f32.mrf.mxu0
        %v512 = vadd.f32 %v312, %v511
        %v513 = vpop.f32.mrf.mxu0
        %v514 = vadd.f32 %v316, %v513
        %v515 = vpop.f32.mrf.mxu0
        %v516 = vadd.f32 %v312, %v515
        %v517 = vpop.f32.mrf.mxu0
        %v518 = vadd.f32 %v316, %v517
        %519 = vmatprep.mubr.bf16.mxu0 0
        %520 = vmatmul.mubr.bf16.gmra.mxu0 %v355
        %v521 = vpop.f32.mrf.mxu0
        %v522 = vadd.f32 %v312, %v521
        %v523 = vpop.f32.mrf.mxu0
        %v524 = vadd.f32 %v316, %v523
        %v525 = vpop.f32.mrf.mxu0
        %v526 = vadd.f32 %v312, %v525
        %v527 = vpop.f32.mrf.mxu0
        %v528 = vadd.f32 %v316, %v527
        %529 = vmatprep.mubr.bf16.mxu0 0
        %530 = vmatmul.mubr.bf16.gmra.mxu0 %v356
        %v531 = vpop.f32.mrf.mxu0
        %v532 = vadd.f32 %v312, %v531
        %v533 = vpop.f32.mrf.mxu0
        %v534 = vadd.f32 %v316, %v533
        %v535 = vpop.f32.mrf.mxu0
        %v536 = vadd.f32 %v312, %v535
        %v537 = vpop.f32.mrf.mxu0
        %v538 = vadd.f32 %v316, %v537
        %539 = vmatprep.mubr.bf16.mxu0 0
        %540 = vmatmul.mubr.bf16.gmra.mxu0 %v357
        %v541 = vpop.f32.mrf.mxu0
        %v542 = vadd.f32 %v312, %v541
        %v543 = vpop.f32.mrf.mxu0
        %v544 = vadd.f32 %v316, %v543
        %v545 = vpop.f32.mrf.mxu0
        %v546 = vadd.f32 %v312, %v545
        %v547 = vpop.f32.mrf.mxu0
        %v548 = vadd.f32 %v316, %v547
        %549 = vmatprep.mubr.bf16.mxu0 0
        %550 = vmatmul.mubr.bf16.gmra.mxu0 %v358
        %v551 = vpop.f32.mrf.mxu0
        %v552 = vadd.f32 %v312, %v551
        %v553 = vpop.f32.mrf.mxu0
        %v554 = vadd.f32 %v316, %v553
        %v555 = vpop.f32.mrf.mxu0
        %v556 = vadd.f32 %v312, %v555
        %v557 = vpop.f32.mrf.mxu0
        %v558 = vadd.f32 %v316, %v557
        %559 = vdwg.mxu0
        %v560 = vmax.f32 %v482, 0.0
        %v561 = vmax.f32 %v484, 0.0
        %v562 = vmax.f32 %v486, 0.0
        %v563 = vmax.f32 %v488, 0.0
        %v564 = vmax.f32 %v492, 0.0
        %v565 = vmax.f32 %v494, 0.0
        %v566 = vmax.f32 %v496, 0.0
        %v567 = vmax.f32 %v498, 0.0
        %v568 = vmax.f32 %v502, 0.0
        %v569 = vmax.f32 %v504, 0.0
        %v570 = vmax.f32 %v506, 0.0
        %v571 = vmax.f32 %v508, 0.0
        %v572 = vmax.f32 %v512, 0.0
        %v573 = vmax.f32 %v514, 0.0
        %v574 = vmax.f32 %v516, 0.0
        %v575 = vmax.f32 %v518, 0.0
        %v576 = vmax.f32 %v522, 0.0
        %v577 = vmax.f32 %v524, 0.0
        %v578 = vmax.f32 %v526, 0.0
        %v579 = vmax.f32 %v528, 0.0
        %v580 = vmax.f32 %v532, 0.0
        %v581 = vmax.f32 %v534, 0.0
        %v582 = vmax.f32 %v536, 0.0
        %v583 = vmax.f32 %v538, 0.0
        %v584 = vmax.f32 %v542, 0.0
        %v585 = vmax.f32 %v544, 0.0
        %v586 = vmax.f32 %v546, 0.0
        %v587 = vmax.f32 %v548, 0.0
        %v588 = vmax.f32 %v552, 0.0
        %v589 = vmax.f32 %v554, 0.0
        %v590 = vmax.f32 %v556, 0.0
        %v591 = vmax.f32 %v558, 0.0
        %592 = vst [vmem:[#allocation2] sm:$0xff] %v560
        %593 = vst [vmem:[#allocation2 + $0x8] sm:$0xff] %v561
        %594 = vst [vmem:[#allocation2 + $0x10] sm:$0xff] %v562
        %595 = vst [vmem:[#allocation2 + $0x18] sm:$0xff] %v563
        %596 = vst [vmem:[#allocation2 + $0x20] sm:$0xff] %v564
        %597 = vst [vmem:[#allocation2 + $0x28] sm:$0xff] %v565
        %598 = vst [vmem:[#allocation2 + $0x30] sm:$0xff] %v566
        %599 = vst [vmem:[#allocation2 + $0x38] sm:$0xff] %v567
        %600 = vst [vmem:[#allocation2 + $0x40] sm:$0xff] %v568
        %601 = vst [vmem:[#allocation2 + $0x48] sm:$0xff] %v569
        %602 = vst [vmem:[#allocation2 + $0x50] sm:$0xff] %v570
        %603 = vst [vmem:[#allocation2 + $0x58] sm:$0xff] %v571
        %604 = vst [vmem:[#allocation2 + $0x60] sm:$0xff] %v572
        %605 = vst [vmem:[#allocation2 + $0x68] sm:$0xff] %v573
        %606 = vst [vmem:[#allocation2 + $0x70] sm:$0xff] %v574
        %607 = vst [vmem:[#allocation2 + $0x78] sm:$0xff] %v575
        %608 = vst [vmem:[#allocation2 + $0x80] sm:$0xff] %v576
        %609 = vst [vmem:[#allocation2 + $0x88] sm:$0xff] %v577
        %610 = vst [vmem:[#allocation2 + $0x90] sm:$0xff] %v578
        %611 = vst [vmem:[#allocation2 + $0x98] sm:$0xff] %v579
        %612 = vst [vmem:[#allocation2 + $0xa0] sm:$0xff] %v580
        %613 = vst [vmem:[#allocation2 + $0xa8] sm:$0xff] %v581
        %614 = vst [vmem:[#allocation2 + $0xb0] sm:$0xff] %v582
        %615 = vst [vmem:[#allocation2 + $0xb8] sm:$0xff] %v583
        %616 = vst [vmem:[#allocation2 + $0xc0] sm:$0xff] %v584
        %617 = vst [vmem:[#allocation2 + $0xc8] sm:$0xff] %v585
        %618 = vst [vmem:[#allocation2 + $0xd0] sm:$0xff] %v586
        %619 = vst [vmem:[#allocation2 + $0xd8] sm:$0xff] %v587
        %620 = vst [vmem:[#allocation2 + $0xe0] sm:$0xff] %v588
        %621 = vst [vmem:[#allocation2 + $0xe8] sm:$0xff] %v589
        %622 = vst [vmem:[#allocation2 + $0xf0] sm:$0xff] %v590
        %623 = vst [vmem:[#allocation2 + $0xf8] sm:$0xff] %v591
        %v624 = vld [vmem:[#allocation2] sm:$0xff]
        %v625 = vld [vmem:[#allocation2 + $0x8] sm:$0xff]
        %v626 = vld [vmem:[#allocation2 + $0x10] sm:$0xff]
        %v627 = vld [vmem:[#allocation2 + $0x18] sm:$0xff]
        %v628 = vld [vmem:[#allocation2 + $0x20] sm:$0xff]
        %v629 = vld [vmem:[#allocation2 + $0x28] sm:$0xff]
        %v630 = vld [vmem:[#allocation2 + $0x30] sm:$0xff]
        %v631 = vld [vmem:[#allocation2 + $0x38] sm:$0xff]
        %v632 = vld [vmem:[#allocation2 + $0x40] sm:$0xff]
        %v633 = vld [vmem:[#allocation2 + $0x48] sm:$0xff]
        %v634 = vld [vmem:[#allocation2 + $0x50] sm:$0xff]
        %v635 = vld [vmem:[#allocation2 + $0x58] sm:$0xff]
        %v636 = vld [vmem:[#allocation2 + $0x60] sm:$0xff]
        %v637 = vld [vmem:[#allocation2 + $0x68] sm:$0xff]
        %v638 = vld [vmem:[#allocation2 + $0x70] sm:$0xff]
        %v639 = vld [vmem:[#allocation2 + $0x78] sm:$0xff]
        %v640 = vld [vmem:[#allocation2 + $0x80] sm:$0xff]
        %v641 = vld [vmem:[#allocation2 + $0x88] sm:$0xff]
        %v642 = vld [vmem:[#allocation2 + $0x90] sm:$0xff]
        %v643 = vld [vmem:[#allocation2 + $0x98] sm:$0xff]
        %v644 = vld [vmem:[#allocation2 + $0xa0] sm:$0xff]
        %v645 = vld [vmem:[#allocation2 + $0xa8] sm:$0xff]
        %v646 = vld [vmem:[#allocation2 + $0xb0] sm:$0xff]
        %v647 = vld [vmem:[#allocation2 + $0xb8] sm:$0xff]
        %v648 = vld [vmem:[#allocation2 + $0xc0] sm:$0xff]
        %v649 = vld [vmem:[#allocation2 + $0xc8] sm:$0xff]
        %v650 = vld [vmem:[#allocation2 + $0xd0] sm:$0xff]
        %v651 = vld [vmem:[#allocation2 + $0xd8] sm:$0xff]
        %v652 = vld [vmem:[#allocation2 + $0xe0] sm:$0xff]
        %v653 = vld [vmem:[#allocation2 + $0xe8] sm:$0xff]
        %v654 = vld [vmem:[#allocation2 + $0xf0] sm:$0xff]
        %v655 = vld [vmem:[#allocation2 + $0xf8] sm:$0xff]
        %v656 = vpack.c.bf16 %v626, %v624
        %v657 = vpack.c.bf16 %v627, %v625
        %v658 = vpack.c.bf16 %v630, %v628
        %v659 = vpack.c.bf16 %v631, %v629
        %v660 = vpack.c.bf16 %v634, %v632
        %v661 = vpack.c.bf16 %v635, %v633
        %v662 = vpack.c.bf16 %v638, %v636
        %v663 = vpack.c.bf16 %v639, %v637
        %v664 = vpack.c.bf16 %v642, %v640
        %v665 = vpack.c.bf16 %v643, %v641
        %v666 = vpack.c.bf16 %v646, %v644
        %v667 = vpack.c.bf16 %v647, %v645
        %v668 = vpack.c.bf16 %v650, %v648
        %v669 = vpack.c.bf16 %v651, %v649
        %v670 = vpack.c.bf16 %v654, %v652
        %v671 = vpack.c.bf16 %v655, %v653
        %v672 = vld [vmem:[#allocation8] sm:$0xff]
        %v673 = vld [vmem:[#allocation8 + $0x8] sm:$0xff]
        %v674 = vld [vmem:[#allocation8 + $0x10] sm:$0xff]
        %v675 = vld [vmem:[#allocation8 + $0x18] sm:$0xff]
        %v676 = vld [vmem:[#allocation8 + $0x20] sm:$0xff]
        %v677 = vld [vmem:[#allocation8 + $0x28] sm:$0xff]
        %v678 = vld [vmem:[#allocation8 + $0x30] sm:$0xff]
        %v679 = vld [vmem:[#allocation8 + $0x38] sm:$0xff]
        %v680 = vld [vmem:[#allocation8 + $0x40] sm:$0xff]
        %v681 = vld [vmem:[#allocation8 + $0x48] sm:$0xff]
        %v682 = vld [vmem:[#allocation8 + $0x50] sm:$0xff]
        %v683 = vld [vmem:[#allocation8 + $0x58] sm:$0xff]
        %v684 = vld [vmem:[#allocation8 + $0x60] sm:$0xff]
        %v685 = vld [vmem:[#allocation8 + $0x68] sm:$0xff]
        %v686 = vld [vmem:[#allocation8 + $0x70] sm:$0xff]
        %v687 = vld [vmem:[#allocation8 + $0x78] sm:$0xff]
        %v688 = vld [vmem:[#allocation8 + $0x80] sm:$0xff]
        %v689 = vld [vmem:[#allocation8 + $0x88] sm:$0xff]
        %v690 = vld [vmem:[#allocation8 + $0x90] sm:$0xff]
        %v691 = vld [vmem:[#allocation8 + $0x98] sm:$0xff]
        %v692 = vld [vmem:[#allocation8 + $0xa0] sm:$0xff]
        %v693 = vld [vmem:[#allocation8 + $0xa8] sm:$0xff]
        %v694 = vld [vmem:[#allocation8 + $0xb0] sm:$0xff]
        %v695 = vld [vmem:[#allocation8 + $0xb8] sm:$0xff]
        %v696 = vld [vmem:[#allocation8 + $0xc0] sm:$0xff]
        %v697 = vld [vmem:[#allocation8 + $0xc8] sm:$0xff]
        %v698 = vld [vmem:[#allocation8 + $0xd0] sm:$0xff]
        %v699 = vld [vmem:[#allocation8 + $0xd8] sm:$0xff]
        %v700 = vld [vmem:[#allocation8 + $0xe0] sm:$0xff]
        %v701 = vld [vmem:[#allocation8 + $0xe8] sm:$0xff]
        %v702 = vld [vmem:[#allocation8 + $0xf0] sm:$0xff]
        %v703 = vld [vmem:[#allocation8 + $0xf8] sm:$0xff]
        %v704 = vld [vmem:[%s4] sm:$0x3]
        %v706 = vlaneseq
        %v707 = vshrl.u32 %v706, 7
        %v708 = vsub.s32 0, %v707
        %v709 = vrot.slane %v704, %v708
        %v710 = vlaneseq
        %v711 = vshrl.u32 %v710, 7
        %v712 = vsub.s32 1, %v711
        %v713 = vrot.slane %v704, %v712
        %v748 = vunpack.c.l.b16 %v672
        %v749 = vunpack.c.h.b16 %v672
        %v750 = vunpack.c.l.b16 %v673
        %v751 = vunpack.c.h.b16 %v673
        %v752 = vunpack.c.l.b16 %v674
        %v753 = vunpack.c.h.b16 %v674
        %v754 = vunpack.c.l.b16 %v675
        %v755 = vunpack.c.h.b16 %v675
        %v756 = vunpack.c.l.b16 %v676
        %v757 = vunpack.c.h.b16 %v676
        %v758 = vunpack.c.l.b16 %v677
        %v759 = vunpack.c.h.b16 %v677
        %v760 = vunpack.c.l.b16 %v678
        %v761 = vunpack.c.h.b16 %v678
        %v762 = vunpack.c.l.b16 %v679
        %v763 = vunpack.c.h.b16 %v679
        %v764 = vunpack.c.l.b16 %v680
        %v765 = vunpack.c.h.b16 %v680
        %v766 = vunpack.c.l.b16 %v681
        %v767 = vunpack.c.h.b16 %v681
        %v768 = vunpack.c.l.b16 %v682
        %v769 = vunpack.c.h.b16 %v682
        %v770 = vunpack.c.l.b16 %v683
        %v771 = vunpack.c.h.b16 %v683
        %v772 = vunpack.c.l.b16 %v684
        %v773 = vunpack.c.h.b16 %v684
        %v774 = vunpack.c.l.b16 %v685
        %v775 = vunpack.c.h.b16 %v685
        %v776 = vunpack.c.l.b16 %v686
        %v777 = vunpack.c.h.b16 %v686
        %v778 = vunpack.c.l.b16 %v687
        %v779 = vunpack.c.h.b16 %v687
        %v780 = vunpack.c.l.b16 %v688
        %v781 = vunpack.c.h.b16 %v688
        %v782 = vunpack.c.l.b16 %v689
        %v783 = vunpack.c.h.b16 %v689
        %v784 = vunpack.c.l.b16 %v690
        %v785 = vunpack.c.h.b16 %v690
        %v786 = vunpack.c.l.b16 %v691
        %v787 = vunpack.c.h.b16 %v691
        %v788 = vunpack.c.l.b16 %v692
        %v789 = vunpack.c.h.b16 %v692
        %v790 = vunpack.c.l.b16 %v693
        %v791 = vunpack.c.h.b16 %v693
        %v792 = vunpack.c.l.b16 %v694
        %v793 = vunpack.c.h.b16 %v694
        %v794 = vunpack.c.l.b16 %v695
        %v795 = vunpack.c.h.b16 %v695
        %v796 = vunpack.c.l.b16 %v696
        %v797 = vunpack.c.h.b16 %v696
        %v798 = vunpack.c.l.b16 %v697
        %v799 = vunpack.c.h.b16 %v697
        %v800 = vunpack.c.l.b16 %v698
        %v801 = vunpack.c.h.b16 %v698
        %v802 = vunpack.c.l.b16 %v699
        %v803 = vunpack.c.h.b16 %v699
        %v804 = vunpack.c.l.b16 %v700
        %v805 = vunpack.c.h.b16 %v700
        %v806 = vunpack.c.l.b16 %v701
        %v807 = vunpack.c.h.b16 %v701
        %v808 = vunpack.c.l.b16 %v702
        %v809 = vunpack.c.h.b16 %v702
        %v810 = vunpack.c.l.b16 %v703
        %v811 = vunpack.c.h.b16 %v703
        %v812 = vpack.c.b16 %v750, %v748
        %v813 = vpack.c.b16 %v751, %v749
        %v814 = vpack.c.b16 %v754, %v752
        %v815 = vpack.c.b16 %v755, %v753
        %v816 = vpack.c.b16 %v758, %v756
        %v817 = vpack.c.b16 %v759, %v757
        %v818 = vpack.c.b16 %v762, %v760
        %v819 = vpack.c.b16 %v763, %v761
        %v820 = vpack.c.b16 %v766, %v764
        %v821 = vpack.c.b16 %v767, %v765
        %v822 = vpack.c.b16 %v770, %v768
        %v823 = vpack.c.b16 %v771, %v769
        %v824 = vpack.c.b16 %v774, %v772
        %v825 = vpack.c.b16 %v775, %v773
        %v826 = vpack.c.b16 %v778, %v776
        %v827 = vpack.c.b16 %v779, %v777
        %v828 = vpack.c.b16 %v782, %v780
        %v829 = vpack.c.b16 %v783, %v781
        %v830 = vpack.c.b16 %v786, %v784
        %v831 = vpack.c.b16 %v787, %v785
        %v832 = vpack.c.b16 %v790, %v788
        %v833 = vpack.c.b16 %v791, %v789
        %v834 = vpack.c.b16 %v794, %v792
        %v835 = vpack.c.b16 %v795, %v793
        %v836 = vpack.c.b16 %v798, %v796
        %v837 = vpack.c.b16 %v799, %v797
        %v838 = vpack.c.b16 %v802, %v800
        %v839 = vpack.c.b16 %v803, %v801
        %v840 = vpack.c.b16 %v806, %v804
        %v841 = vpack.c.b16 %v807, %v805
        %v842 = vpack.c.b16 %v810, %v808
        %v843 = vpack.c.b16 %v811, %v809
        %876 = vmatprep.subr.bf16.mxu0 %v827
        %877 = vmatpush1.bf16.msra.mxu0 %v826
        %878 = vmatprep.subr.bf16.mxu0 %v825
        %879 = vmatpush1.bf16.msra.mxu0 %v824
        %880 = vmatprep.subr.bf16.mxu0 %v823
        %881 = vmatpush1.bf16.msra.mxu0 %v822
        %882 = vmatprep.subr.bf16.mxu0 %v821
        %883 = vmatpush1.bf16.msra.mxu0 %v820
        %884 = vmatprep.subr.bf16.mxu0 %v819
        %885 = vmatpush1.bf16.msra.mxu0 %v818
        %886 = vmatprep.subr.bf16.mxu0 %v817
        %887 = vmatpush1.bf16.msra.mxu0 %v816
        %888 = vmatprep.subr.bf16.mxu0 %v815
        %889 = vmatpush1.bf16.msra.mxu0 %v814
        %890 = vmatprep.subr.bf16.mxu0 %v813
        %891 = vmatpush1.bf16.msra.mxu0 %v812
        %892 = vmatprep.subr.bf16.mxu0 %v843
        %893 = vmatpush2.bf16.msra.mxu0 %v842
        %894 = vmatprep.subr.bf16.mxu0 %v841
        %895 = vmatpush2.bf16.msra.mxu0 %v840
        %896 = vmatprep.subr.bf16.mxu0 %v839
        %897 = vmatpush2.bf16.msra.mxu0 %v838
        %898 = vmatprep.subr.bf16.mxu0 %v837
        %899 = vmatpush2.bf16.msra.mxu0 %v836
        %900 = vmatprep.subr.bf16.mxu0 %v835
        %901 = vmatpush2.bf16.msra.mxu0 %v834
        %902 = vmatprep.subr.bf16.mxu0 %v833
        %903 = vmatpush2.bf16.msra.mxu0 %v832
        %904 = vmatprep.subr.bf16.mxu0 %v831
        %905 = vmatpush2.bf16.msra.mxu0 %v830
        %906 = vmatprep.subr.bf16.mxu0 %v829
        %907 = vmatpush2.bf16.msra.mxu0 %v828
        %908 = vmatprep.mubr.bf16.mxu0 %v657
        %909 = vmatmul.mubr.bf16.gmra.mxu0 %v656
        %v910 = vpop.f32.mrf.mxu0
        %v911 = vadd.f32 %v709, %v910
        %v912 = vpop.f32.mrf.mxu0
        %v913 = vadd.f32 %v713, %v912
        %v914 = vpop.f32.mrf.mxu0
        %v915 = vadd.f32 %v709, %v914
        %v916 = vpop.f32.mrf.mxu0
        %v917 = vadd.f32 %v713, %v916
        %918 = vmatprep.mubr.bf16.mxu0 %v659
        %919 = vmatmul.mubr.bf16.gmra.mxu0 %v658
        %v920 = vpop.f32.mrf.mxu0
        %v921 = vadd.f32 %v709, %v920
        %v922 = vpop.f32.mrf.mxu0
        %v923 = vadd.f32 %v713, %v922
        %v924 = vpop.f32.mrf.mxu0
        %v925 = vadd.f32 %v709, %v924
        %v926 = vpop.f32.mrf.mxu0
        %v927 = vadd.f32 %v713, %v926
        %928 = vmatprep.mubr.bf16.mxu0 %v661
        %929 = vmatmul.mubr.bf16.gmra.mxu0 %v660
        %v930 = vpop.f32.mrf.mxu0
        %v931 = vadd.f32 %v709, %v930
        %v932 = vpop.f32.mrf.mxu0
        %v933 = vadd.f32 %v713, %v932
        %v934 = vpop.f32.mrf.mxu0
        %v935 = vadd.f32 %v709, %v934
        %v936 = vpop.f32.mrf.mxu0
        %v937 = vadd.f32 %v713, %v936
        %938 = vmatprep.mubr.bf16.mxu0 %v663
        %939 = vmatmul.mubr.bf16.gmra.mxu0 %v662
        %v940 = vpop.f32.mrf.mxu0
        %v941 = vadd.f32 %v709, %v940
        %v942 = vpop.f32.mrf.mxu0
        %v943 = vadd.f32 %v713, %v942
        %v944 = vpop.f32.mrf.mxu0
        %v945 = vadd.f32 %v709, %v944
        %v946 = vpop.f32.mrf.mxu0
        %v947 = vadd.f32 %v713, %v946
        %948 = vmatprep.mubr.bf16.mxu0 %v665
        %949 = vmatmul.mubr.bf16.gmra.mxu0 %v664
        %v950 = vpop.f32.mrf.mxu0
        %v951 = vadd.f32 %v709, %v950
        %v952 = vpop.f32.mrf.mxu0
        %v953 = vadd.f32 %v713, %v952
        %v954 = vpop.f32.mrf.mxu0
        %v955 = vadd.f32 %v709, %v954
        %v956 = vpop.f32.mrf.mxu0
        %v957 = vadd.f32 %v713, %v956
        %958 = vmatprep.mubr.bf16.mxu0 %v667
        %959 = vmatmul.mubr.bf16.gmra.mxu0 %v666
        %v960 = vpop.f32.mrf.mxu0
        %v961 = vadd.f32 %v709, %v960
        %v962 = vpop.f32.mrf.mxu0
        %v963 = vadd.f32 %v713, %v962
        %v964 = vpop.f32.mrf.mxu0
        %v965 = vadd.f32 %v709, %v964
        %v966 = vpop.f32.mrf.mxu0
        %v967 = vadd.f32 %v713, %v966
        %968 = vmatprep.mubr.bf16.mxu0 %v669
        %969 = vmatmul.mubr.bf16.gmra.mxu0 %v668
        %v970 = vpop.f32.mrf.mxu0
        %v971 = vadd.f32 %v709, %v970
        %v972 = vpop.f32.mrf.mxu0
        %v973 = vadd.f32 %v713, %v972
        %v974 = vpop.f32.mrf.mxu0
        %v975 = vadd.f32 %v709, %v974
        %v976 = vpop.f32.mrf.mxu0
        %v977 = vadd.f32 %v713, %v976
        %978 = vmatprep.mubr.bf16.mxu0 %v671
        %979 = vmatmul.mubr.bf16.gmra.mxu0 %v670
        %v980 = vpop.f32.mrf.mxu0
        %v981 = vadd.f32 %v709, %v980
        %v982 = vpop.f32.mrf.mxu0
        %v983 = vadd.f32 %v713, %v982
        %v984 = vpop.f32.mrf.mxu0
        %v985 = vadd.f32 %v709, %v984
        %v986 = vpop.f32.mrf.mxu0
        %v987 = vadd.f32 %v713, %v986
        %988 = vdwg.mxu0
        %v989 = vmax.f32 %v911, 0.0
        %v990 = vmax.f32 %v913, 0.0
        %v991 = vmax.f32 %v915, 0.0
        %v992 = vmax.f32 %v917, 0.0
        %v993 = vmax.f32 %v921, 0.0
        %v994 = vmax.f32 %v923, 0.0
        %v995 = vmax.f32 %v925, 0.0
        %v996 = vmax.f32 %v927, 0.0
        %v997 = vmax.f32 %v931, 0.0
        %v998 = vmax.f32 %v933, 0.0
        %v999 = vmax.f32 %v935, 0.0
        %v1000 = vmax.f32 %v937, 0.0
        %v1001 = vmax.f32 %v941, 0.0
        %v1002 = vmax.f32 %v943, 0.0
        %v1003 = vmax.f32 %v945, 0.0
        %v1004 = vmax.f32 %v947, 0.0
        %v1005 = vmax.f32 %v951, 0.0
        %v1006 = vmax.f32 %v953, 0.0
        %v1007 = vmax.f32 %v955, 0.0
        %v1008 = vmax.f32 %v957, 0.0
        %v1009 = vmax.f32 %v961, 0.0
        %v1010 = vmax.f32 %v963, 0.0
        %v1011 = vmax.f32 %v965, 0.0
        %v1012 = vmax.f32 %v967, 0.0
        %v1013 = vmax.f32 %v971, 0.0
        %v1014 = vmax.f32 %v973, 0.0
        %v1015 = vmax.f32 %v975, 0.0
        %v1016 = vmax.f32 %v977, 0.0
        %v1017 = vmax.f32 %v981, 0.0
        %v1018 = vmax.f32 %v983, 0.0
        %v1019 = vmax.f32 %v985, 0.0
        %v1020 = vmax.f32 %v987, 0.0
        %v1021 = vpack.c.bf16 %v991, %v989
        %v1022 = vpack.c.bf16 %v992, %v990
        %v1023 = vpack.c.bf16 %v995, %v993
        %v1024 = vpack.c.bf16 %v996, %v994
        %v1025 = vpack.c.bf16 %v999, %v997
        %v1026 = vpack.c.bf16 %v1000, %v998
        %v1027 = vpack.c.bf16 %v1003, %v1001
        %v1028 = vpack.c.bf16 %v1004, %v1002
        %v1029 = vpack.c.bf16 %v1007, %v1005
        %v1030 = vpack.c.bf16 %v1008, %v1006
        %v1031 = vpack.c.bf16 %v1011, %v1009
        %v1032 = vpack.c.bf16 %v1012, %v1010
        %v1033 = vpack.c.bf16 %v1015, %v1013
        %v1034 = vpack.c.bf16 %v1016, %v1014
        %v1035 = vpack.c.bf16 %v1019, %v1017
        %v1036 = vpack.c.bf16 %v1020, %v1018
        %v1053 = vunpack.c.l.b16 %v1021
        %v1054 = vunpack.c.l.b16 %v1022
        %v1055 = vunpack.c.h.b16 %v1021
        %v1056 = vunpack.c.h.b16 %v1022
        %v1057 = vunpack.c.l.b16 %v1023
        %v1058 = vunpack.c.l.b16 %v1024
        %v1059 = vunpack.c.h.b16 %v1023
        %v1060 = vunpack.c.h.b16 %v1024
        %v1061 = vunpack.c.l.b16 %v1025
        %v1062 = vunpack.c.l.b16 %v1026
        %v1063 = vunpack.c.h.b16 %v1025
        %v1064 = vunpack.c.h.b16 %v1026
        %v1065 = vunpack.c.l.b16 %v1027
        %v1066 = vunpack.c.l.b16 %v1028
        %v1067 = vunpack.c.h.b16 %v1027
        %v1068 = vunpack.c.h.b16 %v1028
        %v1069 = vunpack.c.l.b16 %v1029
        %v1070 = vunpack.c.l.b16 %v1030
        %v1071 = vunpack.c.h.b16 %v1029
        %v1072 = vunpack.c.h.b16 %v1030
        %v1073 = vunpack.c.l.b16 %v1031
        %v1074 = vunpack.c.l.b16 %v1032
        %v1075 = vunpack.c.h.b16 %v1031
        %v1076 = vunpack.c.h.b16 %v1032
        %v1077 = vunpack.c.l.b16 %v1033
        %v1078 = vunpack.c.l.b16 %v1034
        %v1079 = vunpack.c.h.b16 %v1033
        %v1080 = vunpack.c.h.b16 %v1034
        %v1081 = vunpack.c.l.b16 %v1035
        %v1082 = vunpack.c.l.b16 %v1036
        %v1083 = vunpack.c.h.b16 %v1035
        %v1084 = vunpack.c.h.b16 %v1036
        %v1085 = vpack.c.b16 %v1054, %v1053
        %v1086 = vpack.c.b16 %v1056, %v1055
        %v1087 = vpack.c.b16 %v1058, %v1057
        %v1088 = vpack.c.b16 %v1060, %v1059
        %v1089 = vpack.c.b16 %v1062, %v1061
        %v1090 = vpack.c.b16 %v1064, %v1063
        %v1091 = vpack.c.b16 %v1066, %v1065
        %v1092 = vpack.c.b16 %v1068, %v1067
        %v1093 = vpack.c.b16 %v1070, %v1069
        %v1094 = vpack.c.b16 %v1072, %v1071
        %v1095 = vpack.c.b16 %v1074, %v1073
        %v1096 = vpack.c.b16 %v1076, %v1075
        %v1097 = vpack.c.b16 %v1078, %v1077
        %v1098 = vpack.c.b16 %v1080, %v1079
        %v1099 = vpack.c.b16 %v1082, %v1081
        %v1100 = vpack.c.b16 %v1084, %v1083
        %1117 = vst [vmem:[%s271] sm:$0xff] %v1085
        %1118 = vst [vmem:[%s271 + $0x8] sm:$0xff] %v1086
        %1119 = vst [vmem:[%s271 + $0x10] sm:$0xff] %v1087
        %1120 = vst [vmem:[%s271 + $0x18] sm:$0xff] %v1088
        %1121 = vst [vmem:[%s271 + $0x20] sm:$0xff] %v1089
        %1122 = vst [vmem:[%s271 + $0x28] sm:$0xff] %v1090
        %1123 = vst [vmem:[%s271 + $0x30] sm:$0xff] %v1091
        %1124 = vst [vmem:[%s271 + $0x38] sm:$0xff] %v1092
        %1125 = vst [vmem:[%s271 + $0x40] sm:$0xff] %v1093
        %1126 = vst [vmem:[%s271 + $0x48] sm:$0xff] %v1094
        %1127 = vst [vmem:[%s271 + $0x50] sm:$0xff] %v1095
        %1128 = vst [vmem:[%s271 + $0x58] sm:$0xff] %v1096
        %1129 = vst [vmem:[%s271 + $0x60] sm:$0xff] %v1097
        %1130 = vst [vmem:[%s271 + $0x68] sm:$0xff] %v1098
        %1131 = vst [vmem:[%s271 + $0x70] sm:$0xff] %v1099
        %1132 = vst [vmem:[%s271 + $0x78] sm:$0xff] %v1100
        %s1133 = sand.u32 %s141, 1
        %s1134 = scalar_lea.sflag [#allocation5], %s1133
        %s1135 = sand.u32 %s141, 1
        %s1136 = smul.addr %s1135, 128
        %s1137 = scalar_lea.vmem [#allocation9], %s1136
        // Predicated region
        $region53: #{tpu_custom_call.1} parent=39 // pred_check
          %p1138 = pneg %p151
        $region54: #{tpu_custom_call.1} parent=39 // pred_check_branch
          %1140 = sbr.rel (%p1138) target = $region56
        $region55: #{tpu_custom_call.1} parent=39 // pred_region
          %s1141 = smul.u32 16, %s23
          %s1143 = ssub.s32 2048, 2048
          %1144 = vsyncadd %s1134, %s1143
          %s1145 = smul.addr %s1141, 2
          %s1146 = smul.addr %s1145, 64
          %s1147 = scalar_lea.hbm %s5, %s1146
          %s1148 = sshll.u32 %s1137, 4
          %s1149 = int_to_ptr.vmem [resolvable:$true] %s1148
          %1154 = dma.vmem_to_hbm [thread:$0]  %s1149, 2048, %s1147, %s1134, 128, 128, 8
        $region56: #{tpu_custom_call.1} parent=39 // pred_fallthru
          _
      $region40: #{tpu_custom_call.1} parent=5 // pred_fallthru
        _
      %p1155 = scmp.le.s32.totalorder 2, %s18
      // Predicated region
      $region57: #{tpu_custom_call.1} parent=5 // pred_check
        %p1156 = pneg %p1155
      $region58: #{tpu_custom_call.1} parent=5 // pred_check_branch
        %1158 = sbr.rel (%p1156) target = $region60
      $region59: #{tpu_custom_call.1} parent=5 // pred_region
        %s1159 = ssub.s32 %s18, 2
        // Predicated region
        $region61: #{tpu_custom_call.1} parent=59 // pred_check
          %p1160 = pneg %p157
        $region62: #{tpu_custom_call.1} parent=59 // pred_check_branch
          %1162 = sbr.rel (%p1160) target = $region64
        $region63: #{tpu_custom_call.1} parent=59 // pred_region
          %s1163 = sand.u32 %s142, 1
          %s1164 = scalar_lea.sflag [#allocation5], %s1163
          %s1165 = sand.u32 %s142, 1
          %s1166 = smul.addr %s1165, 128
          %s1167 = scalar_lea.vmem [#allocation9], %s1166
          %1168 = dma.done %s1164, 2048
        $region64: #{tpu_custom_call.1} parent=59 // pred_fallthru
          _
      $region60: #{tpu_custom_call.1} parent=5 // pred_fallthru
        _
    $region6: #{tpu_custom_call.1} parent=1 // loop_footer
      %s22 = sadd.s32 1, %s18
    $region7: #{tpu_custom_call.1} parent=1 // loop_footer_branch
      %17 = sbr.rel target = $region3
    $region8: #{tpu_custom_call.1} parent=1 // loop_exit
      _
    %1169 = vsyncpa [#allocation4], 1
    %s1170 = scalar_lea.sflag [#allocation4], 1
    %1171 = vsyncpa %s1170, 1
    %1172 = vsyncpa [#allocation7], 1
    %1173 = vsyncpa [#allocation5], 1
    %s1174 = scalar_lea.sflag [#allocation5], 1
    %1175 = vsyncpa %s1174, 1

// kernel: tpu_custom_call.1
$region0: #{tpu_custom_call.1}
  #allocation0 [shape = 'u32[]', space=smem, size = 0x4, offset = 0x4, fixed_abs, tag = 'smem constant byte address 0x4 - core index']
  #allocation1 [shape = 'u32[144,128]{1,0:T(1,128)}', space=vmem, size = 0x12000, scoped, tag = 'internal scratch']
  #allocation2 [shape = 'f32[128,256]{1,0:T(8,128)}', space=vmem, size = 0x20000, scoped, tag = 'scratch operand']
  %s0 = inlined_call_operand.hbm [shape: bf16[256,128], index: 0, kind: input, shape index: {}]
  %s1 = inlined_call_operand.hbm [shape: bf16[128,256], index: 1, kind: input, shape index: {}]
  %s2 = inlined_call_operand.vmem [shape: f32[1,256], index: 2, kind: input, shape index: {}]
  %s3 = inlined_call_operand.hbm [shape: bf16[256,256], index: 3, kind: input, shape index: {}]
  %s4 = inlined_call_operand.vmem [shape: f32[1,256], index: 4, kind: input, shape index: {}]
  %s5 = inlined_call_operand.hbm [shape: bf16[256,256], index: 5, kind: output, shape index: {}]
  %s6 = sld [smem:[#allocation0]]
  $region65: #{tpu_custom_call.1} parent=0
    _
  %s8 = ssub.s32 1, %s6
  %s9 = scalar_select 0, %s8, %s6
  $region1: #{tpu_custom_call.1} parent=0
    #allocation3 [shape = 'u8[65536]{0}', space=vmem, size = 0x10000, scoped, tag = 'input window, operand 0']
    #allocation4 [shape = 's32[2]{0}', space=sflag, size = 0x8, scoped, tag = 'scoped memory for tpu_custom_call.1']
    #allocation5 [shape = 's32[2]{0}', space=sflag, size = 0x8, scoped, tag = 'scoped memory for tpu_custom_call.1']
    #allocation6 [shape = 'u8[65536]{0}', space=vmem, size = 0x10000, scoped, tag = 'input window, operand 1, single buffered']
    #allocation7 [shape = 's32[1]{0}', space=sflag, size = 0x4, scoped, tag = 'scoped memory for tpu_custom_call.1']
    #allocation8 [shape = 'u8[131072]{0}', space=vmem, size = 0x20000, scoped, tag = 'input window, operand 3, single buffered']
    #allocation9 [shape = 'u8[131072]{0}', space=vmem, size = 0x20000, scoped, tag = 'output window, operand 0']
    %10 = vsyncpa [#allocation4], 0
    %s11 = scalar_lea.sflag [#allocation4], 1
    %12 = vsyncpa %s11, 0
    %13 = vsyncpa [#allocation7], 0
    %14 = vsyncpa [#allocation5], 0
    %s15 = scalar_lea.sflag [#allocation5], 1
    %16 = vsyncpa %s15, 0
    loop: start=0, step=1, limit=4
    $region2: #{tpu_custom_call.1} parent=1 // loop_pre_header
      _
    $region3: #{tpu_custom_call.1} parent=1 // loop_header
      %s18 = sphi 0, %s22
      %p19 = scmp.ge.s32.totalorder %s18, 4
      %s28 = sphi 0, %s30
      %s31 = sphi 0, %s28
      %s32 = sphi 0, %s31
      %s48 = sphi 0, %s32
      %s52 = sphi 0, %s52
      %s54 = sphi 0, %s52
      %s55 = sphi 0, %s54
      %s69 = sphi 0, %s55
      %s73 = sphi 0, %s73
      %s75 = sphi 0, %s73
      %s76 = sphi 0, %s75
      %s90 = sphi 0, %s76
      %s94 = sphi 0, %s94
      %s96 = sphi 0, %s94
      %s97 = sphi 0, %s96
      %s111 = sphi 0, %s97
      %s115 = sphi 0, %s115
      %s117 = sphi 0, %s115
      %s118 = sphi 0, %s117
      %s132 = sphi 0, %s118
      %s138 = sphi 0, %s140
      %s141 = sphi 0, %s138
      %s142 = sphi 0, %s141
      %s158 = sphi 0, %s142
    $region4: #{tpu_custom_call.1} parent=1 // loop_header_branch
      %21 = sbr.rel (%p19) target = $region8
    $region5: #{tpu_custom_call.1} parent=1 // loop_body
      %s23 = ssub.s32 %s18, 1
      %s24 = ssub.s32 %s18, 2
      %s25 = sadd.s32 %s18, 1
      %s26 = ssub.s32 %s18, %s25
      %p27 = scmp.eq.s32.totalorder %s26, 0
      %s29 = sadd.s32 %s28, 1
      %s30 = scalar_select %p27, %s28, %s29
      %p33 = pneg %p27
      %p34 = scmp.eq.s32.totalorder %s18, 1
      %p35 = por %p33, %p34
      %p36 = scmp.ne.s32.totalorder %s28, %s31
      %p37 = scmp.eq.s32.totalorder %s18, 0
      %p38 = por %p36, %p37
      %p39 = scmp.ne.s32.totalorder %s28, %s31
      %p40 = scmp.eq.s32.totalorder %s23, 1
      %p41 = por %p39, %p40
      %p42 = scmp.ne.s32.totalorder %s31, %s32
      %p43 = scmp.eq.s32.totalorder %s23, 0
      %p44 = por %p42, %p43
      %p45 = scmp.ne.s32.totalorder %s31, %s32
      %p46 = scmp.eq.s32.totalorder %s24, 1
      %p47 = por %p45, %p46
      %p49 = scmp.ne.s32.totalorder %s32, %s48
      %p50 = scmp.eq.s32.totalorder %s24, 0
      %p51 = por %p49, %p50
      %s53 = sadd.s32 %s52, 1
      %p56 = scmp.eq.s32.totalorder %s18, 1
      %p57 = scmp.ne.s32.totalorder %s52, %s54
      %p58 = scmp.eq.s32.totalorder %s18, 0
      %p59 = por %p57, %p58
      %p60 = scmp.ne.s32.totalorder %s52, %s54
      %p61 = scmp.eq.s32.totalorder %s23, 1
      %p62 = por %p60, %p61
      %p63 = scmp.ne.s32.totalorder %s54, %s55
      %p64 = scmp.eq.s32.totalorder %s23, 0
      %p65 = por %p63, %p64
      %p66 = scmp.ne.s32.totalorder %s54, %s55
      %p67 = scmp.eq.s32.totalorder %s24, 1
      %p68 = por %p66, %p67
      %p70 = scmp.ne.s32.totalorder %s55, %s69
      %p71 = scmp.eq.s32.totalorder %s24, 0
      %p72 = por %p70, %p71
      %s74 = sadd.s32 %s73, 1
      %p77 = scmp.eq.s32.totalorder %s18, 1
      %p78 = scmp.ne.s32.totalorder %s73, %s75
      %p79 = scmp.eq.s32.totalorder %s18, 0
      %p80 = por %p78, %p79
      %p81 = scmp.ne.s32.totalorder %s73, %s75
      %p82 = scmp.eq.s32.totalorder %s23, 1
      %p83 = por %p81, %p82
      %p84 = scmp.ne.s32.totalorder %s75, %s76
      %p85 = scmp.eq.s32.totalorder %s23, 0
      %p86 = por %p84, %p85
      %p87 = scmp.ne.s32.totalorder %s75, %s76
      %p88 = scmp.eq.s32.totalorder %s24, 1
      %p89 = por %p87, %p88
      %p91 = scmp.ne.s32.totalorder %s76, %s90
      %p92 = scmp.eq.s32.totalorder %s24, 0
      %p93 = por %p91, %p92
      %s95 = sadd.s32 %s94, 1
      %p98 = scmp.eq.s32.totalorder %s18, 1
      %p99 = scmp.ne.s32.totalorder %s94, %s96
      %p100 = scmp.eq.s32.totalorder %s18, 0
      %p101 = por %p99, %p100
      %p102 = scmp.ne.s32.totalorder %s94, %s96
      %p103 = scmp.eq.s32.totalorder %s23, 1
      %p104 = por %p102, %p103
      %p105 = scmp.ne.s32.totalorder %s96, %s97
      %p106 = scmp.eq.s32.totalorder %s23, 0
      %p107 = por %p105, %p106
      %p108 = scmp.ne.s32.totalorder %s96, %s97
      %p109 = scmp.eq.s32.totalorder %s24, 1
      %p110 = por %p108, %p109
      %p112 = scmp.ne.s32.totalorder %s97, %s111
      %p113 = scmp.eq.s32.totalorder %s24, 0
      %p114 = por %p112, %p113
      %s116 = sadd.s32 %s115, 1
      %p119 = scmp.eq.s32.totalorder %s18, 1
      %p120 = scmp.ne.s32.totalorder %s115, %s117
      %p121 = scmp.eq.s32.totalorder %s18, 0
      %p122 = por %p120, %p121
      %p123 = scmp.ne.s32.totalorder %s115, %s117
      %p124 = scmp.eq.s32.totalorder %s23, 1
      %p125 = por %p123, %p124
      %p126 = scmp.ne.s32.totalorder %s117, %s118
      %p127 = scmp.eq.s32.totalorder %s23, 0
      %p128 = por %p126, %p127
      %p129 = scmp.ne.s32.totalorder %s117, %s118
      %p130 = scmp.eq.s32.totalorder %s24, 1
      %p131 = por %p129, %p130
      %p133 = scmp.ne.s32.totalorder %s118, %s132
      %p134 = scmp.eq.s32.totalorder %s24, 0
      %p135 = por %p133, %p134
      %s136 = ssub.s32 %s18, %s25
      %p137 = scmp.eq.s32.totalorder %s136, 0
      %s139 = sadd.s32 %s138, 1
      %s140 = scalar_select %p137, %s138, %s139
      %p143 = pneg %p137
      %p144 = scmp.eq.s32.totalorder %s18, 1
      %p145 = por %p143, %p144
      %p146 = scmp.ne.s32.totalorder %s138, %s141
      %p147 = scmp.eq.s32.totalorder %s18, 0
      %p148 = por %p146, %p147
      %p149 = scmp.ne.s32.totalorder %s138, %s141
      %p150 = scmp.eq.s32.totalorder %s23, 1
      %p151 = por %p149, %p150
      %p152 = scmp.ne.s32.totalorder %s141, %s142
      %p153 = scmp.eq.s32.totalorder %s23, 0
      %p154 = por %p152, %p153
      %p155 = scmp.ne.s32.totalorder %s141, %s142
      %p156 = scmp.eq.s32.totalorder %s24, 1
      %p157 = por %p155, %p156
      %p159 = scmp.ne.s32.totalorder %s142, %s158
      %p160 = scmp.eq.s32.totalorder %s24, 0
      %p161 = por %p159, %p160
      %p162 = scmp.le.s32.totalorder 1, %s18
      %p163 = scmp.lt.s32.totalorder %s18, 3
      %p164 = pnand %p162, %p163
      %p165 = pneg %p164
      // Predicated region
      $region9: #{tpu_custom_call.1} parent=5 // pred_check
        _
      $region10: #{tpu_custom_call.1} parent=5 // pred_check_branch
        %167 = sbr.rel (%p164) target = $region12
      $region11: #{tpu_custom_call.1} parent=5 // pred_region
        %s168 = ssub.s32 %s18, 1
        // Predicated region
        $region13: #{tpu_custom_call.1} parent=11 // pred_check
          %p169 = pneg %p65
        $region14: #{tpu_custom_call.1} parent=11 // pred_check_branch
          %171 = sbr.rel (%p169) target = $region16
        $region15: #{tpu_custom_call.1} parent=11 // pred_region
          %s173 = ssub.s32 2048, 2048
          %174 = vsyncadd [#allocation7], %s173
          %s175 = sshll.u32 [#allocation6], 4
          %s176 = int_to_ptr.vmem [resolvable:$true] %s175
          %181 = dma.hbm_to_vmem [thread:$0]  %s1, 2048, %s176, [#allocation7], 128, 128, 8
        $region16: #{tpu_custom_call.1} parent=11 // pred_fallthru
          _
        // Predicated region
        $region17: #{tpu_custom_call.1} parent=11 // pred_check
          %p182 = pneg %p86
        $region18: #{tpu_custom_call.1} parent=11 // pred_check_branch
          %184 = sbr.rel (%p182) target = $region20
        $region19: #{tpu_custom_call.1} parent=11 // pred_region
          _
        $region20: #{tpu_custom_call.1} parent=11 // pred_fallthru
          _
        // Predicated region
        $region21: #{tpu_custom_call.1} parent=11 // pred_check
          %p185 = pneg %p107
        $region22: #{tpu_custom_call.1} parent=11 // pred_check_branch
          %187 = sbr.rel (%p185) target = $region24
        $region23: #{tpu_custom_call.1} parent=11 // pred_region
          %s189 = ssub.s32 4096, 4096
          %190 = vsyncadd [#allocation7], %s189
          %s191 = sshll.u32 [#allocation8], 4
          %s192 = int_to_ptr.vmem [resolvable:$true] %s191
          %197 = dma.hbm_to_vmem [thread:$0]  %s3, 4096, %s192, [#allocation7], 128, 128, 8
        $region24: #{tpu_custom_call.1} parent=11 // pred_fallthru
          _
        // Predicated region
        $region25: #{tpu_custom_call.1} parent=11 // pred_check
          %p198 = pneg %p128
        $region26: #{tpu_custom_call.1} parent=11 // pred_check_branch
          %200 = sbr.rel (%p198) target = $region28
        $region27: #{tpu_custom_call.1} parent=11 // pred_region
          _
        $region28: #{tpu_custom_call.1} parent=11 // pred_fallthru
          _
      $region12: #{tpu_custom_call.1} parent=5 // pred_fallthru
        _
      %p201 = scmp.lt.s32.totalorder %s18, 2
      // Predicated region
      $region29: #{tpu_custom_call.1} parent=5 // pred_check
        %p202 = pneg %p201
      $region30: #{tpu_custom_call.1} parent=5 // pred_check_branch
        %204 = sbr.rel (%p202) target = $region32
      $region31: #{tpu_custom_call.1} parent=5 // pred_region
        // Predicated region
        $region33: #{tpu_custom_call.1} parent=31 // pred_check
          %p205 = pneg %p38
        $region34: #{tpu_custom_call.1} parent=31 // pred_check_branch
          %207 = sbr.rel (%p205) target = $region36
        $region35: #{tpu_custom_call.1} parent=31 // pred_region
          %s208 = sand.u32 %s28, 1
          %s209 = scalar_lea.sflag [#allocation4], %s208
          %s210 = sand.u32 %s28, 1
          %s211 = smul.addr %s210, 64
          %s212 = scalar_lea.vmem [#allocation3], %s211
          %s213 = smul.u32 16, %s18
          %s215 = ssub.s32 1024, 1024
          %216 = vsyncadd %s209, %s215
          %s217 = smul.addr %s213, 64
          %s218 = scalar_lea.hbm %s0, %s217
          %s219 = sshll.u32 %s212, 4
          %s220 = int_to_ptr.vmem [resolvable:$true] %s219
          %225 = dma.hbm_to_vmem [thread:$0]  %s218, 1024, %s220, %s209, 64, 64, 4
        $region36: #{tpu_custom_call.1} parent=31 // pred_fallthru
          _
      $region32: #{tpu_custom_call.1} parent=5 // pred_fallthru
        _
      %p226 = scmp.le.s32.totalorder 1, %s18
      %p227 = scmp.lt.s32.totalorder %s18, 3
      %p228 = pnand %p226, %p227
      %p229 = pneg %p228
      // Predicated region
      $region37: #{tpu_custom_call.1} parent=5 // pred_check
        _
      $region38: #{tpu_custom_call.1} parent=5 // pred_check_branch
        %231 = sbr.rel (%p228) target = $region40
      $region39: #{tpu_custom_call.1} parent=5 // pred_region
        %s232 = ssub.s32 %s18, 1
        %s233 = sand.u32 %s31, 1
        %s234 = scalar_lea.sflag [#allocation4], %s233
        %s235 = sand.u32 %s31, 1
        %s236 = smul.addr %s235, 64
        %s237 = scalar_lea.vmem [#allocation3], %s236
        // Predicated region
        $region41: #{tpu_custom_call.1} parent=39 // pred_check
          %p238 = pneg %p44
        $region42: #{tpu_custom_call.1} parent=39 // pred_check_branch
          %240 = sbr.rel (%p238) target = $region44
        $region43: #{tpu_custom_call.1} parent=39 // pred_region
          %241 = dma.done %s234, 1024
        $region44: #{tpu_custom_call.1} parent=39 // pred_fallthru
          _
        // Predicated region
        $region45: #{tpu_custom_call.1} parent=39 // pred_check
          %p242 = pneg %p65
        $region46: #{tpu_custom_call.1} parent=39 // pred_check_branch
          %244 = sbr.rel (%p242) target = $region48
        $region47: #{tpu_custom_call.1} parent=39 // pred_region
          %245 = dma.done [#allocation7], 2048
        $region48: #{tpu_custom_call.1} parent=39 // pred_fallthru
          _
        // Predicated region
        $region49: #{tpu_custom_call.1} parent=39 // pred_check
          %p246 = pneg %p107
        $region50: #{tpu_custom_call.1} parent=39 // pred_check_branch
          %248 = sbr.rel (%p246) target = $region52
        $region51: #{tpu_custom_call.1} parent=39 // pred_region
          %249 = dma.done [#allocation7], 4096
        $region52: #{tpu_custom_call.1} parent=39 // pred_fallthru
          _
        %s250 = sand.u32 %s31, 1
        %s251 = scalar_lea.sflag [#allocation4], %s250
        %s252 = sand.u32 %s31, 1
        %s253 = smul.addr %s252, 64
        %s254 = scalar_lea.vmem [#allocation3], %s253
        %p255 = pneg %p44
        %p256 = pneg %p41
        %p257 = pneg %p65
        %p258 = pneg %p62
        %p259 = pneg %p86
        %p260 = pneg %p83
        %p261 = pneg %p107
        %p262 = pneg %p104
        %p263 = pneg %p128
        %p264 = pneg %p125
        %p265 = pneg %p154
        %p266 = pneg %p151
        %s267 = sand.u32 %s141, 1
        %s268 = scalar_lea.sflag [#allocation5], %s267
        %s269 = sand.u32 %s141, 1
        %s270 = smul.addr %s269, 128
        %s271 = scalar_lea.vmem [#allocation9], %s270
        %s272 = smul.u32 16, %s23
        %s273 = smul.u32 16, %s23
        %v275 = vld [vmem:[%s237] sm:$0xf]
        %v276 = vld [vmem:[%s237 + $0x4] sm:$0xf]
        %v277 = vld [vmem:[%s237 + $0x8] sm:$0xf]
        %v278 = vld [vmem:[%s237 + $0xc] sm:$0xf]
        %v279 = vld [vmem:[%s237 + $0x10] sm:$0xf]
        %v280 = vld [vmem:[%s237 + $0x14] sm:$0xf]
        %v281 = vld [vmem:[%s237 + $0x18] sm:$0xf]
        %v282 = vld [vmem:[%s237 + $0x1c] sm:$0xf]
        %v283 = vld [vmem:[%s237 + $0x20] sm:$0xf]
        %v284 = vld [vmem:[%s237 + $0x24] sm:$0xf]
        %v285 = vld [vmem:[%s237 + $0x28] sm:$0xf]
        %v286 = vld [vmem:[%s237 + $0x2c] sm:$0xf]
        %v287 = vld [vmem:[%s237 + $0x30] sm:$0xf]
        %v288 = vld [vmem:[%s237 + $0x34] sm:$0xf]
        %v289 = vld [vmem:[%s237 + $0x38] sm:$0xf]
        %v290 = vld [vmem:[%s237 + $0x3c] sm:$0xf]
        %v291 = vld [vmem:[#allocation6] sm:$0xff]
        %v292 = vld [vmem:[#allocation6 + $0x8] sm:$0xff]
        %v293 = vld [vmem:[#allocation6 + $0x10] sm:$0xff]
        %v294 = vld [vmem:[#allocation6 + $0x18] sm:$0xff]
        %v295 = vld [vmem:[#allocation6 + $0x20] sm:$0xff]
        %v296 = vld [vmem:[#allocation6 + $0x28] sm:$0xff]
        %v297 = vld [vmem:[#allocation6 + $0x30] sm:$0xff]
        %v298 = vld [vmem:[#allocation6 + $0x38] sm:$0xff]
        %v299 = vld [vmem:[#allocation6 + $0x40] sm:$0xff]
        %v300 = vld [vmem:[#allocation6 + $0x48] sm:$0xff]
        %v301 = vld [vmem:[#allocation6 + $0x50] sm:$0xff]
        %v302 = vld [vmem:[#allocation6 + $0x58] sm:$0xff]
        %v303 = vld [vmem:[#allocation6 + $0x60] sm:$0xff]
        %v304 = vld [vmem:[#allocation6 + $0x68] sm:$0xff]
        %v305 = vld [vmem:[#allocation6 + $0x70] sm:$0xff]
        %v306 = vld [vmem:[#allocation6 + $0x78] sm:$0xff]
        %v307 = vld [vmem:[%s2] sm:$0x3]
        %v309 = vlaneseq
        %v310 = vshrl.u32 %v309, 7
        %v311 = vsub.s32 0, %v310
        %v312 = vrot.slane %v307, %v311
        %v313 = vlaneseq
        %v314 = vshrl.u32 %v313, 7
        %v315 = vsub.s32 1, %v314
        %v316 = vrot.slane %v307, %v315
        %v335 = vunpack.c.l.b16 %v275
        %v336 = vunpack.c.l.b16 %v276
        %v337 = vunpack.c.l.b16 %v277
        %v338 = vunpack.c.l.b16 %v278
        %v339 = vunpack.c.l.b16 %v279
        %v340 = vunpack.c.l.b16 %v280
        %v341 = vunpack.c.l.b16 %v281
        %v342 = vunpack.c.l.b16 %v282
        %v343 = vunpack.c.l.b16 %v283
        %v344 = vunpack.c.l.b16 %v284
        %v345 = vunpack.c.l.b16 %v285
        %v346 = vunpack.c.l.b16 %v286
        %v347 = vunpack.c.l.b16 %v287
        %v348 = vunpack.c.l.b16 %v288
        %v349 = vunpack.c.l.b16 %v289
        %v350 = vunpack.c.l.b16 %v290
        %v351 = vpack.c.b16 %v336, %v335
        %v352 = vpack.c.b16 %v338, %v337
        %v353 = vpack.c.b16 %v340, %v339
        %v354 = vpack.c.b16 %v342, %v341
        %v355 = vpack.c.b16 %v344, %v343
        %v356 = vpack.c.b16 %v346, %v345
        %v357 = vpack.c.b16 %v348, %v347
        %v358 = vpack.c.b16 %v350, %v349
        %v383 = vunpack.c.l.b16 %v291
        %v384 = vunpack.c.h.b16 %v291
        %v385 = vunpack.c.l.b16 %v292
        %v386 = vunpack.c.h.b16 %v292
        %v387 = vunpack.c.l.b16 %v293
        %v388 = vunpack.c.h.b16 %v293
        %v389 = vunpack.c.l.b16 %v294
        %v390 = vunpack.c.h.b16 %v294
        %v391 = vunpack.c.l.b16 %v295
        %v392 = vunpack.c.h.b16 %v295
        %v393 = vunpack.c.l.b16 %v296
        %v394 = vunpack.c.h.b16 %v296
        %v395 = vunpack.c.l.b16 %v297
        %v396 = vunpack.c.h.b16 %v297
        %v397 = vunpack.c.l.b16 %v298
        %v398 = vunpack.c.h.b16 %v298
        %v399 = vunpack.c.l.b16 %v299
        %v400 = vunpack.c.h.b16 %v299
        %v401 = vunpack.c.l.b16 %v300
        %v402 = vunpack.c.h.b16 %v300
        %v403 = vunpack.c.l.b16 %v301
        %v404 = vunpack.c.h.b16 %v301
        %v405 = vunpack.c.l.b16 %v302
        %v406 = vunpack.c.h.b16 %v302
        %v407 = vunpack.c.l.b16 %v303
        %v408 = vunpack.c.h.b16 %v303
        %v409 = vunpack.c.l.b16 %v304
        %v410 = vunpack.c.h.b16 %v304
        %v411 = vunpack.c.l.b16 %v305
        %v412 = vunpack.c.h.b16 %v305
        %v413 = vunpack.c.l.b16 %v306
        %v414 = vunpack.c.h.b16 %v306
        %v415 = vpack.c.b16 %v385, %v383
        %v416 = vpack.c.b16 %v386, %v384
        %v417 = vpack.c.b16 %v389, %v387
        %v418 = vpack.c.b16 %v390, %v388
        %v419 = vpack.c.b16 %v393, %v391
        %v420 = vpack.c.b16 %v394, %v392
        %v421 = vpack.c.b16 %v397, %v395
        %v422 = vpack.c.b16 %v398, %v396
        %v423 = vpack.c.b16 %v401, %v399
        %v424 = vpack.c.b16 %v402, %v400
        %v425 = vpack.c.b16 %v405, %v403
        %v426 = vpack.c.b16 %v406, %v404
        %v427 = vpack.c.b16 %v409, %v407
        %v428 = vpack.c.b16 %v410, %v408
        %v429 = vpack.c.b16 %v413, %v411
        %v430 = vpack.c.b16 %v414, %v412
        %447 = vmatprep.subr.bf16.mxu0 %v430
        %448 = vmatpush1.bf16.msra.mxu0 %v429
        %449 = vmatprep.subr.bf16.mxu0 %v428
        %450 = vmatpush1.bf16.msra.mxu0 %v427
        %451 = vmatprep.subr.bf16.mxu0 %v426
        %452 = vmatpush1.bf16.msra.mxu0 %v425
        %453 = vmatprep.subr.bf16.mxu0 %v424
        %454 = vmatpush1.bf16.msra.mxu0 %v423
        %455 = vmatprep.subr.bf16.mxu0 %v422
        %456 = vmatpush1.bf16.msra.mxu0 %v421
        %457 = vmatprep.subr.bf16.mxu0 %v420
        %458 = vmatpush1.bf16.msra.mxu0 %v419
        %459 = vmatprep.subr.bf16.mxu0 %v418
        %460 = vmatpush1.bf16.msra.mxu0 %v417
        %461 = vmatprep.subr.bf16.mxu0 %v416
        %462 = vmatpush1.bf16.msra.mxu0 %v415
        %463 = vmatprep.subr.bf16.mxu0 0
        %464 = vmatpush2.bf16.msra.mxu0 0
        %465 = vmatprep.subr.bf16.mxu0 0
        %466 = vmatpush2.bf16.msra.mxu0 0
        %467 = vmatprep.subr.bf16.mxu0 0
        %468 = vmatpush2.bf16.msra.mxu0 0
        %469 = vmatprep.subr.bf16.mxu0 0
        %470 = vmatpush2.bf16.msra.mxu0 0
        %471 = vmatprep.subr.bf16.mxu0 0
        %472 = vmatpush2.bf16.msra.mxu0 0
        %473 = vmatprep.subr.bf16.mxu0 0
        %474 = vmatpush2.bf16.msra.mxu0 0
        %475 = vmatprep.subr.bf16.mxu0 0
        %476 = vmatpush2.bf16.msra.mxu0 0
        %477 = vmatprep.subr.bf16.mxu0 0
        %478 = vmatpush2.bf16.msra.mxu0 0
        %479 = vmatprep.mubr.bf16.mxu0 0
        %480 = vmatmul.mubr.bf16.gmra.mxu0 %v351
        %v481 = vpop.f32.mrf.mxu0
        %v482 = vadd.f32 %v312, %v481
        %v483 = vpop.f32.mrf.mxu0
        %v484 = vadd.f32 %v316, %v483
        %v485 = vpop.f32.mrf.mxu0
        %v486 = vadd.f32 %v312, %v485
        %v487 = vpop.f32.mrf.mxu0
        %v488 = vadd.f32 %v316, %v487
        %489 = vmatprep.mubr.bf16.mxu0 0
        %490 = vmatmul.mubr.bf16.gmra.mxu0 %v352
        %v491 = vpop.f32.mrf.mxu0
        %v492 = vadd.f32 %v312, %v491
        %v493 = vpop.f32.mrf.mxu0
        %v494 = vadd.f32 %v316, %v493
        %v495 = vpop.f32.mrf.mxu0
        %v496 = vadd.f32 %v312, %v495
        %v497 = vpop.f32.mrf.mxu0
        %v498 = vadd.f32 %v316, %v497
        %499 = vmatprep.mubr.bf16.mxu0 0
        %500 = vmatmul.mubr.bf16.gmra.mxu0 %v353
        %v501 = vpop.f32.mrf.mxu0
        %v502 = vadd.f32 %v312, %v501
        %v503 = vpop.f32.mrf.mxu0
        %v504 = vadd.f32 %v316, %v503
        %v505 = vpop.f32.mrf.mxu0
        %v506 = vadd.f32 %v312, %v505
        %v507 = vpop.f32.mrf.mxu0
        %v508 = vadd.f32 %v316, %v507
        %509 = vmatprep.mubr.bf16.mxu0 0
        %510 = vmatmul.mubr.bf16.gmra.mxu0 %v354
        %v511 = vpop.f32.mrf.mxu0
        %v512 = vadd.f32 %v312, %v511
        %v513 = vpop.f32.mrf.mxu0
        %v514 = vadd.f32 %v316, %v513
        %v515 = vpop.f32.mrf.mxu0
        %v516 = vadd.f32 %v312, %v515
        %v517 = vpop.f32.mrf.mxu0
        %v518 = vadd.f32 %v316, %v517
        %519 = vmatprep.mubr.bf16.mxu0 0
        %520 = vmatmul.mubr.bf16.gmra.mxu0 %v355
        %v521 = vpop.f32.mrf.mxu0
        %v522 = vadd.f32 %v312, %v521
        %v523 = vpop.f32.mrf.mxu0
        %v524 = vadd.f32 %v316, %v523
        %v525 = vpop.f32.mrf.mxu0
        %v526 = vadd.f32 %v312, %v525
        %v527 = vpop.f32.mrf.mxu0
        %v528 = vadd.f32 %v316, %v527
        %529 = vmatprep.mubr.bf16.mxu0 0
        %530 = vmatmul.mubr.bf16.gmra.mxu0 %v356
        %v531 = vpop.f32.mrf.mxu0
        %v532 = vadd.f32 %v312, %v531
        %v533 = vpop.f32.mrf.mxu0
        %v534 = vadd.f32 %v316, %v533
        %v535 = vpop.f32.mrf.mxu0
        %v536 = vadd.f32 %v312, %v535
        %v537 = vpop.f32.mrf.mxu0
        %v538 = vadd.f32 %v316, %v537
        %539 = vmatprep.mubr.bf16.mxu0 0
        %540 = vmatmul.mubr.bf16.gmra.mxu0 %v357
        %v541 = vpop.f32.mrf.mxu0
        %v542 = vadd.f32 %v312, %v541
        %v543 = vpop.f32.mrf.mxu0
        %v544 = vadd.f32 %v316, %v543
        %v545 = vpop.f32.mrf.mxu0
        %v546 = vadd.f32 %v312, %v545
        %v547 = vpop.f32.mrf.mxu0
        %v548 = vadd.f32 %v316, %v547
        %549 = vmatprep.mubr.bf16.mxu0 0
        %550 = vmatmul.mubr.bf16.gmra.mxu0 %v358
        %v551 = vpop.f32.mrf.mxu0
        %v552 = vadd.f32 %v312, %v551
        %v553 = vpop.f32.mrf.mxu0
        %v554 = vadd.f32 %v316, %v553
        %v555 = vpop.f32.mrf.mxu0
        %v556 = vadd.f32 %v312, %v555
        %v557 = vpop.f32.mrf.mxu0
        %v558 = vadd.f32 %v316, %v557
        %559 = vdwg.mxu0
        %v560 = vmax.f32 %v482, 0.0
        %v561 = vmax.f32 %v484, 0.0
        %v562 = vmax.f32 %v486, 0.0
        %v563 = vmax.f32 %v488, 0.0
        %v564 = vmax.f32 %v492, 0.0
        %v565 = vmax.f32 %v494, 0.0
        %v566 = vmax.f32 %v496, 0.0
        %v567 = vmax.f32 %v498, 0.0
        %v568 = vmax.f32 %v502, 0.0
        %v569 = vmax.f32 %v504, 0.0
        %v570 = vmax.f32 %v506, 0.0
        %v571 = vmax.f32 %v508, 0.0
        %v572 = vmax.f32 %v512, 0.0
        %v573 = vmax.f32 %v514, 0.0
        %v574 = vmax.f32 %v516, 0.0
        %v575 = vmax.f32 %v518, 0.0
        %v576 = vmax.f32 %v522, 0.0
        %v577 = vmax.f32 %v524, 0.0
        %v578 = vmax.f32 %v526, 0.0
        %v579 = vmax.f32 %v528, 0.0
        %v580 = vmax.f32 %v532, 0.0
        %v581 = vmax.f32 %v534, 0.0
        %v582 = vmax.f32 %v536, 0.0
        %v583 = vmax.f32 %v538, 0.0
        %v584 = vmax.f32 %v542, 0.0
        %v585 = vmax.f32 %v544, 0.0
        %v586 = vmax.f32 %v546, 0.0
        %v587 = vmax.f32 %v548, 0.0
        %v588 = vmax.f32 %v552, 0.0
        %v589 = vmax.f32 %v554, 0.0
        %v590 = vmax.f32 %v556, 0.0
        %v591 = vmax.f32 %v558, 0.0
        %592 = vst [vmem:[#allocation2] sm:$0xff] %v560
        %593 = vst [vmem:[#allocation2 + $0x8] sm:$0xff] %v561
        %594 = vst [vmem:[#allocation2 + $0x10] sm:$0xff] %v562
        %595 = vst [vmem:[#allocation2 + $0x18] sm:$0xff] %v563
        %596 = vst [vmem:[#allocation2 + $0x20] sm:$0xff] %v564
        %597 = vst [vmem:[#allocation2 + $0x28] sm:$0xff] %v565
        %598 = vst [vmem:[#allocation2 + $0x30] sm:$0xff] %v566
        %599 = vst [vmem:[#allocation2 + $0x38] sm:$0xff] %v567
        %600 = vst [vmem:[#allocation2 + $0x40] sm:$0xff] %v568
        %601 = vst [vmem:[#allocation2 + $0x48] sm:$0xff] %v569
        %602 = vst [vmem:[#allocation2 + $0x50] sm:$0xff] %v570
        %603 = vst [vmem:[#allocation2 + $0x58] sm:$0xff] %v571
        %604 = vst [vmem:[#allocation2 + $0x60] sm:$0xff] %v572
        %605 = vst [vmem:[#allocation2 + $0x68] sm:$0xff] %v573
        %606 = vst [vmem:[#allocation2 + $0x70] sm:$0xff] %v574
        %607 = vst [vmem:[#allocation2 + $0x78] sm:$0xff] %v575
        %608 = vst [vmem:[#allocation2 + $0x80] sm:$0xff] %v576
        %609 = vst [vmem:[#allocation2 + $0x88] sm:$0xff] %v577
        %610 = vst [vmem:[#allocation2 + $0x90] sm:$0xff] %v578
        %611 = vst [vmem:[#allocation2 + $0x98] sm:$0xff] %v579
        %612 = vst [vmem:[#allocation2 + $0xa0] sm:$0xff] %v580
        %613 = vst [vmem:[#allocation2 + $0xa8] sm:$0xff] %v581
        %614 = vst [vmem:[#allocation2 + $0xb0] sm:$0xff] %v582
        %615 = vst [vmem:[#allocation2 + $0xb8] sm:$0xff] %v583
        %616 = vst [vmem:[#allocation2 + $0xc0] sm:$0xff] %v584
        %617 = vst [vmem:[#allocation2 + $0xc8] sm:$0xff] %v585
        %618 = vst [vmem:[#allocation2 + $0xd0] sm:$0xff] %v586
        %619 = vst [vmem:[#allocation2 + $0xd8] sm:$0xff] %v587
        %620 = vst [vmem:[#allocation2 + $0xe0] sm:$0xff] %v588
        %621 = vst [vmem:[#allocation2 + $0xe8] sm:$0xff] %v589
        %622 = vst [vmem:[#allocation2 + $0xf0] sm:$0xff] %v590
        %623 = vst [vmem:[#allocation2 + $0xf8] sm:$0xff] %v591
        %v624 = vld [vmem:[#allocation2] sm:$0xff]
        %v625 = vld [vmem:[#allocation2 + $0x8] sm:$0xff]
        %v626 = vld [vmem:[#allocation2 + $0x10] sm:$0xff]
        %v627 = vld [vmem:[#allocation2 + $0x18] sm:$0xff]
        %v628 = vld [vmem:[#allocation2 + $0x20] sm:$0xff]
        %v629 = vld [vmem:[#allocation2 + $0x28] sm:$0xff]
        %v630 = vld [vmem:[#allocation2 + $0x30] sm:$0xff]
        %v631 = vld [vmem:[#allocation2 + $0x38] sm:$0xff]
        %v632 = vld [vmem:[#allocation2 + $0x40] sm:$0xff]
        %v633 = vld [vmem:[#allocation2 + $0x48] sm:$0xff]
        %v634 = vld [vmem:[#allocation2 + $0x50] sm:$0xff]
        %v635 = vld [vmem:[#allocation2 + $0x58] sm:$0xff]
        %v636 = vld [vmem:[#allocation2 + $0x60] sm:$0xff]
        %v637 = vld [vmem:[#allocation2 + $0x68] sm:$0xff]
        %v638 = vld [vmem:[#allocation2 + $0x70] sm:$0xff]
        %v639 = vld [vmem:[#allocation2 + $0x78] sm:$0xff]
        %v640 = vld [vmem:[#allocation2 + $0x80] sm:$0xff]
        %v641 = vld [vmem:[#allocation2 + $0x88] sm:$0xff]
        %v642 = vld [vmem:[#allocation2 + $0x90] sm:$0xff]
        %v643 = vld [vmem:[#allocation2 + $0x98] sm:$0xff]
        %v644 = vld [vmem:[#allocation2 + $0xa0] sm:$0xff]
        %v645 = vld [vmem:[#allocation2 + $0xa8] sm:$0xff]
        %v646 = vld [vmem:[#allocation2 + $0xb0] sm:$0xff]
        %v647 = vld [vmem:[#allocation2 + $0xb8] sm:$0xff]
        %v648 = vld [vmem:[#allocation2 + $0xc0] sm:$0xff]
        %v649 = vld [vmem:[#allocation2 + $0xc8] sm:$0xff]
        %v650 = vld [vmem:[#allocation2 + $0xd0] sm:$0xff]
        %v651 = vld [vmem:[#allocation2 + $0xd8] sm:$0xff]
        %v652 = vld [vmem:[#allocation2 + $0xe0] sm:$0xff]
        %v653 = vld [vmem:[#allocation2 + $0xe8] sm:$0xff]
        %v654 = vld [vmem:[#allocation2 + $0xf0] sm:$0xff]
        %v655 = vld [vmem:[#allocation2 + $0xf8] sm:$0xff]
        %v656 = vpack.c.bf16 %v626, %v624
        %v657 = vpack.c.bf16 %v627, %v625
        %v658 = vpack.c.bf16 %v630, %v628
        %v659 = vpack.c.bf16 %v631, %v629
        %v660 = vpack.c.bf16 %v634, %v632
        %v661 = vpack.c.bf16 %v635, %v633
        %v662 = vpack.c.bf16 %v638, %v636
        %v663 = vpack.c.bf16 %v639, %v637
        %v664 = vpack.c.bf16 %v642, %v640
        %v665 = vpack.c.bf16 %v643, %v641
        %v666 = vpack.c.bf16 %v646, %v644
        %v667 = vpack.c.bf16 %v647, %v645
        %v668 = vpack.c.bf16 %v650, %v648
        %v669 = vpack.c.bf16 %v651, %v649
        %v670 = vpack.c.bf16 %v654, %v652
        %v671 = vpack.c.bf16 %v655, %v653
        %v672 = vld [vmem:[#allocation8] sm:$0xff]
        %v673 = vld [vmem:[#allocation8 + $0x8] sm:$0xff]
        %v674 = vld [vmem:[#allocation8 + $0x10] sm:$0xff]
        %v675 = vld [vmem:[#allocation8 + $0x18] sm:$0xff]
        %v676 = vld [vmem:[#allocation8 + $0x20] sm:$0xff]
        %v677 = vld [vmem:[#allocation8 + $0x28] sm:$0xff]
        %v678 = vld [vmem:[#allocation8 + $0x30] sm:$0xff]
        %v679 = vld [vmem:[#allocation8 + $0x38] sm:$0xff]
        %v680 = vld [vmem:[#allocation8 + $0x40] sm:$0xff]
        %v681 = vld [vmem:[#allocation8 + $0x48] sm:$0xff]
        %v682 = vld [vmem:[#allocation8 + $0x50] sm:$0xff]
        %v683 = vld [vmem:[#allocation8 + $0x58] sm:$0xff]
        %v684 = vld [vmem:[#allocation8 + $0x60] sm:$0xff]
        %v685 = vld [vmem:[#allocation8 + $0x68] sm:$0xff]
        %v686 = vld [vmem:[#allocation8 + $0x70] sm:$0xff]
        %v687 = vld [vmem:[#allocation8 + $0x78] sm:$0xff]
        %v688 = vld [vmem:[#allocation8 + $0x80] sm:$0xff]
        %v689 = vld [vmem:[#allocation8 + $0x88] sm:$0xff]
        %v690 = vld [vmem:[#allocation8 + $0x90] sm:$0xff]
        %v691 = vld [vmem:[#allocation8 + $0x98] sm:$0xff]
        %v692 = vld [vmem:[#allocation8 + $0xa0] sm:$0xff]
        %v693 = vld [vmem:[#allocation8 + $0xa8] sm:$0xff]
        %v694 = vld [vmem:[#allocation8 + $0xb0] sm:$0xff]
        %v695 = vld [vmem:[#allocation8 + $0xb8] sm:$0xff]
        %v696 = vld [vmem:[#allocation8 + $0xc0] sm:$0xff]
        %v697 = vld [vmem:[#allocation8 + $0xc8] sm:$0xff]
        %v698 = vld [vmem:[#allocation8 + $0xd0] sm:$0xff]
        %v699 = vld [vmem:[#allocation8 + $0xd8] sm:$0xff]
        %v700 = vld [vmem:[#allocation8 + $0xe0] sm:$0xff]
        %v701 = vld [vmem:[#allocation8 + $0xe8] sm:$0xff]
        %v702 = vld [vmem:[#allocation8 + $0xf0] sm:$0xff]
        %v703 = vld [vmem:[#allocation8 + $0xf8] sm:$0xff]
        %v704 = vld [vmem:[%s4] sm:$0x3]
        %v706 = vlaneseq
        %v707 = vshrl.u32 %v706, 7
        %v708 = vsub.s32 0, %v707
        %v709 = vrot.slane %v704, %v708
        %v710 = vlaneseq
        %v711 = vshrl.u32 %v710, 7
        %v712 = vsub.s32 1, %v711
        %v713 = vrot.slane %v704, %v712
        %v748 = vunpack.c.l.b16 %v672
        %v749 = vunpack.c.h.b16 %v672
        %v750 = vunpack.c.l.b16 %v673
        %v751 = vunpack.c.h.b16 %v673
        %v752 = vunpack.c.l.b16 %v674
        %v753 = vunpack.c.h.b16 %v674
        %v754 = vunpack.c.l.b16 %v675
        %v755 = vunpack.c.h.b16 %v675
        %v756 = vunpack.c.l.b16 %v676
        %v757 = vunpack.c.h.b16 %v676
        %v758 = vunpack.c.l.b16 %v677
        %v759 = vunpack.c.h.b16 %v677
        %v760 = vunpack.c.l.b16 %v678
        %v761 = vunpack.c.h.b16 %v678
        %v762 = vunpack.c.l.b16 %v679
        %v763 = vunpack.c.h.b16 %v679
        %v764 = vunpack.c.l.b16 %v680
        %v765 = vunpack.c.h.b16 %v680
        %v766 = vunpack.c.l.b16 %v681
        %v767 = vunpack.c.h.b16 %v681
        %v768 = vunpack.c.l.b16 %v682
        %v769 = vunpack.c.h.b16 %v682
        %v770 = vunpack.c.l.b16 %v683
        %v771 = vunpack.c.h.b16 %v683
        %v772 = vunpack.c.l.b16 %v684
        %v773 = vunpack.c.h.b16 %v684
        %v774 = vunpack.c.l.b16 %v685
        %v775 = vunpack.c.h.b16 %v685
        %v776 = vunpack.c.l.b16 %v686
        %v777 = vunpack.c.h.b16 %v686
        %v778 = vunpack.c.l.b16 %v687
        %v779 = vunpack.c.h.b16 %v687
        %v780 = vunpack.c.l.b16 %v688
        %v781 = vunpack.c.h.b16 %v688
        %v782 = vunpack.c.l.b16 %v689
        %v783 = vunpack.c.h.b16 %v689
        %v784 = vunpack.c.l.b16 %v690
        %v785 = vunpack.c.h.b16 %v690
        %v786 = vunpack.c.l.b16 %v691
        %v787 = vunpack.c.h.b16 %v691
        %v788 = vunpack.c.l.b16 %v692
        %v789 = vunpack.c.h.b16 %v692
        %v790 = vunpack.c.l.b16 %v693
        %v791 = vunpack.c.h.b16 %v693
        %v792 = vunpack.c.l.b16 %v694
        %v793 = vunpack.c.h.b16 %v694
        %v794 = vunpack.c.l.b16 %v695
        %v795 = vunpack.c.h.b16 %v695
        %v796 = vunpack.c.l.b16 %v696
        %v797 = vunpack.c.h.b16 %v696
        %v798 = vunpack.c.l.b16 %v697
        %v799 = vunpack.c.h.b16 %v697
        %v800 = vunpack.c.l.b16 %v698
        %v801 = vunpack.c.h.b16 %v698
        %v802 = vunpack.c.l.b16 %v699
        %v803 = vunpack.c.h.b16 %v699
        %v804 = vunpack.c.l.b16 %v700
        %v805 = vunpack.c.h.b16 %v700
        %v806 = vunpack.c.l.b16 %v701
        %v807 = vunpack.c.h.b16 %v701
        %v808 = vunpack.c.l.b16 %v702
        %v809 = vunpack.c.h.b16 %v702
        %v810 = vunpack.c.l.b16 %v703
        %v811 = vunpack.c.h.b16 %v703
        %v812 = vpack.c.b16 %v750, %v748
        %v813 = vpack.c.b16 %v751, %v749
        %v814 = vpack.c.b16 %v754, %v752
        %v815 = vpack.c.b16 %v755, %v753
        %v816 = vpack.c.b16 %v758, %v756
        %v817 = vpack.c.b16 %v759, %v757
        %v818 = vpack.c.b16 %v762, %v760
        %v819 = vpack.c.b16 %v763, %v761
        %v820 = vpack.c.b16 %v766, %v764
        %v821 = vpack.c.b16 %v767, %v765
        %v822 = vpack.c.b16 %v770, %v768
        %v823 = vpack.c.b16 %v771, %v769
        %v824 = vpack.c.b16 %v774, %v772
        %v825 = vpack.c.b16 %v775, %v773
        %v826 = vpack.c.b16 %v778, %v776
        %v827 = vpack.c.b16 %v779, %v777
        %v828 = vpack.c.b16 %v782, %v780
        %v829 = vpack.c.b16 %v783, %v781
        %v830 = vpack.c.b16 %v786, %v784
        %v831 = vpack.c.b16 %v787, %v785
        %v832 = vpack.c.b16 %v790, %v788
        %v833 = vpack.c.b16 %v791, %v789
        %v834 = vpack.c.b16 %v794, %v792
        %v835 = vpack.c.b16 %v795, %v793
        %v836 = vpack.c.b16 %v798, %v796
        %v837 = vpack.c.b16 %v799, %v797
        %v838 = vpack.c.b16 %v802, %v800
        %v839 = vpack.c.b16 %v803, %v801
        %v840 = vpack.c.b16 %v806, %v804
        %v841 = vpack.c.b16 %v807, %v805
        %v842 = vpack.c.b16 %v810, %v808
        %v843 = vpack.c.b16 %v811, %v809
        %876 = vmatprep.subr.bf16.mxu0 %v827
        %877 = vmatpush1.bf16.msra.mxu0 %v826
        %878 = vmatprep.subr.bf16.mxu0 %v825
        %879 = vmatpush1.bf16.msra.mxu0 %v824
        %880 = vmatprep.subr.bf16.mxu0 %v823
        %881 = vmatpush1.bf16.msra.mxu0 %v822
        %882 = vmatprep.subr.bf16.mxu0 %v821
        %883 = vmatpush1.bf16.msra.mxu0 %v820
        %884 = vmatprep.subr.bf16.mxu0 %v819
        %885 = vmatpush1.bf16.msra.mxu0 %v818
        %886 = vmatprep.subr.bf16.mxu0 %v817
        %887 = vmatpush1.bf16.msra.mxu0 %v816
        %888 = vmatprep.subr.bf16.mxu0 %v815
        %889 = vmatpush1.bf16.msra.mxu0 %v814
        %890 = vmatprep.subr.bf16.mxu0 %v813
        %891 = vmatpush1.bf16.msra.mxu0 %v812
        %892 = vmatprep.subr.bf16.mxu0 %v843
        %893 = vmatpush2.bf16.msra.mxu0 %v842
        %894 = vmatprep.subr.bf16.mxu0 %v841
        %895 = vmatpush2.bf16.msra.mxu0 %v840
        %896 = vmatprep.subr.bf16.mxu0 %v839
        %897 = vmatpush2.bf16.msra.mxu0 %v838
        %898 = vmatprep.subr.bf16.mxu0 %v837
        %899 = vmatpush2.bf16.msra.mxu0 %v836
        %900 = vmatprep.subr.bf16.mxu0 %v835
        %901 = vmatpush2.bf16.msra.mxu0 %v834
        %902 = vmatprep.subr.bf16.mxu0 %v833
        %903 = vmatpush2.bf16.msra.mxu0 %v832
        %904 = vmatprep.subr.bf16.mxu0 %v831
        %905 = vmatpush2.bf16.msra.mxu0 %v830
        %906 = vmatprep.subr.bf16.mxu0 %v829
        %907 = vmatpush2.bf16.msra.mxu0 %v828
        %908 = vmatprep.mubr.bf16.mxu0 %v657
        %909 = vmatmul.mubr.bf16.gmra.mxu0 %v656
        %v910 = vpop.f32.mrf.mxu0
        %v911 = vadd.f32 %v709, %v910
        %v912 = vpop.f32.mrf.mxu0
        %v913 = vadd.f32 %v713, %v912
        %v914 = vpop.f32.mrf.mxu0
        %v915 = vadd.f32 %v709, %v914
        %v916 = vpop.f32.mrf.mxu0
        %v917 = vadd.f32 %v713, %v916
        %918 = vmatprep.mubr.bf16.mxu0 %v659
        %919 = vmatmul.mubr.bf16.gmra.mxu0 %v658
        %v920 = vpop.f32.mrf.mxu0
        %v921 = vadd.f32 %v709, %v920
        %v922 = vpop.f32.mrf.mxu0
        %v923 = vadd.f32 %v713, %v922
        %v924 = vpop.f32.mrf.mxu0
        %v925 = vadd.f32 %v709, %v924
        %v926 = vpop.f32.mrf.mxu0
        %v927 = vadd.f32 %v713, %v926
        %928 = vmatprep.mubr.bf16.mxu0 %v661
        %929 = vmatmul.mubr.bf16.gmra.mxu0 %v660
        %v930 = vpop.f32.mrf.mxu0
        %v931 = vadd.f32 %v709, %v930
        %v932 = vpop.f32.mrf.mxu0
        %v933 = vadd.f32 %v713, %v932
        %v934 = vpop.f32.mrf.mxu0
        %v935 = vadd.f32 %v709, %v934
        %v936 = vpop.f32.mrf.mxu0
        %v937 = vadd.f32 %v713, %v936
        %938 = vmatprep.mubr.bf16.mxu0 %v663
        %939 = vmatmul.mubr.bf16.gmra.mxu0 %v662
        %v940 = vpop.f32.mrf.mxu0
        %v941 = vadd.f32 %v709, %v940
        %v942 = vpop.f32.mrf.mxu0
        %v943 = vadd.f32 %v713, %v942
        %v944 = vpop.f32.mrf.mxu0
        %v945 = vadd.f32 %v709, %v944
        %v946 = vpop.f32.mrf.mxu0
        %v947 = vadd.f32 %v713, %v946
        %948 = vmatprep.mubr.bf16.mxu0 %v665
        %949 = vmatmul.mubr.bf16.gmra.mxu0 %v664
        %v950 = vpop.f32.mrf.mxu0
        %v951 = vadd.f32 %v709, %v950
        %v952 = vpop.f32.mrf.mxu0
        %v953 = vadd.f32 %v713, %v952
        %v954 = vpop.f32.mrf.mxu0
        %v955 = vadd.f32 %v709, %v954
        %v956 = vpop.f32.mrf.mxu0
        %v957 = vadd.f32 %v713, %v956
        %958 = vmatprep.mubr.bf16.mxu0 %v667
        %959 = vmatmul.mubr.bf16.gmra.mxu0 %v666
        %v960 = vpop.f32.mrf.mxu0
        %v961 = vadd.f32 %v709, %v960
        %v962 = vpop.f32.mrf.mxu0
        %v963 = vadd.f32 %v713, %v962
        %v964 = vpop.f32.mrf.mxu0
        %v965 = vadd.f32 %v709, %v964
        %v966 = vpop.f32.mrf.mxu0
        %v967 = vadd.f32 %v713, %v966
        %968 = vmatprep.mubr.bf16.mxu0 %v669
        %969 = vmatmul.mubr.bf16.gmra.mxu0 %v668
        %v970 = vpop.f32.mrf.mxu0
        %v971 = vadd.f32 %v709, %v970
        %v972 = vpop.f32.mrf.mxu0
        %v973 = vadd.f32 %v713, %v972
        %v974 = vpop.f32.mrf.mxu0
        %v975 = vadd.f32 %v709, %v974
        %v976 = vpop.f32.mrf.mxu0
        %v977 = vadd.f32 %v713, %v976
        %978 = vmatprep.mubr.bf16.mxu0 %v671
        %979 = vmatmul.mubr.bf16.gmra.mxu0 %v670
        %v980 = vpop.f32.mrf.mxu0
        %v981 = vadd.f32 %v709, %v980
        %v982 = vpop.f32.mrf.mxu0
        %v983 = vadd.f32 %v713, %v982
        %v984 = vpop.f32.mrf.mxu0
        %v985 = vadd.f32 %v709, %v984
        %v986 = vpop.f32.mrf.mxu0
        %v987 = vadd.f32 %v713, %v986
        %988 = vdwg.mxu0
        %v989 = vmax.f32 %v911, 0.0
        %v990 = vmax.f32 %v913, 0.0
        %v991 = vmax.f32 %v915, 0.0
        %v992 = vmax.f32 %v917, 0.0
        %v993 = vmax.f32 %v921, 0.0
        %v994 = vmax.f32 %v923, 0.0
        %v995 = vmax.f32 %v925, 0.0
        %v996 = vmax.f32 %v927, 0.0
        %v997 = vmax.f32 %v931, 0.0
        %v998 = vmax.f32 %v933, 0.0
        %v999 = vmax.f32 %v935, 0.0
        %v1000 = vmax.f32 %v937, 0.0
        %v1001 = vmax.f32 %v941, 0.0
        %v1002 = vmax.f32 %v943, 0.0
        %v1003 = vmax.f32 %v945, 0.0
        %v1004 = vmax.f32 %v947, 0.0
        %v1005 = vmax.f32 %v951, 0.0
        %v1006 = vmax.f32 %v953, 0.0
        %v1007 = vmax.f32 %v955, 0.0
        %v1008 = vmax.f32 %v957, 0.0
        %v1009 = vmax.f32 %v961, 0.0
        %v1010 = vmax.f32 %v963, 0.0
        %v1011 = vmax.f32 %v965, 0.0
        %v1012 = vmax.f32 %v967, 0.0
        %v1013 = vmax.f32 %v971, 0.0
        %v1014 = vmax.f32 %v973, 0.0
        %v1015 = vmax.f32 %v975, 0.0
        %v1016 = vmax.f32 %v977, 0.0
        %v1017 = vmax.f32 %v981, 0.0
        %v1018 = vmax.f32 %v983, 0.0
        %v1019 = vmax.f32 %v985, 0.0
        %v1020 = vmax.f32 %v987, 0.0
        %v1021 = vpack.c.bf16 %v991, %v989
        %v1022 = vpack.c.bf16 %v992, %v990
        %v1023 = vpack.c.bf16 %v995, %v993
        %v1024 = vpack.c.bf16 %v996, %v994
        %v1025 = vpack.c.bf16 %v999, %v997
        %v1026 = vpack.c.bf16 %v1000, %v998
        %v1027 = vpack.c.bf16 %v1003, %v1001
        %v1028 = vpack.c.bf16 %v1004, %v1002
        %v1029 = vpack.c.bf16 %v1007, %v1005
        %v1030 = vpack.c.bf16 %v1008, %v1006
        %v1031 = vpack.c.bf16 %v1011, %v1009
        %v1032 = vpack.c.bf16 %v1012, %v1010
        %v1033 = vpack.c.bf16 %v1015, %v1013
        %v1034 = vpack.c.bf16 %v1016, %v1014
        %v1035 = vpack.c.bf16 %v1019, %v1017
        %v1036 = vpack.c.bf16 %v1020, %v1018
        %v1053 = vunpack.c.l.b16 %v1021
        %v1054 = vunpack.c.l.b16 %v1022
        %v1055 = vunpack.c.h.b16 %v1021
        %v1056 = vunpack.c.h.b16 %v1022
        %v1057 = vunpack.c.l.b16 %v1023
        %v1058 = vunpack.c.l.b16 %v1024
        %v1059 = vunpack.c.h.b16 %v1023
        %v1060 = vunpack.c.h.b16 %v1024
        %v1061 = vunpack.c.l.b16 %v1025
        %v1062 = vunpack.c.l.b16 %v1026
        %v1063 = vunpack.c.h.b16 %v1025
        %v1064 = vunpack.c.h.b16 %v1026
        %v1065 = vunpack.c.l.b16 %v1027
        %v1066 = vunpack.c.l.b16 %v1028
        %v1067 = vunpack.c.h.b16 %v1027
        %v1068 = vunpack.c.h.b16 %v1028
        %v1069 = vunpack.c.l.b16 %v1029
        %v1070 = vunpack.c.l.b16 %v1030
        %v1071 = vunpack.c.h.b16 %v1029
        %v1072 = vunpack.c.h.b16 %v1030
        %v1073 = vunpack.c.l.b16 %v1031
        %v1074 = vunpack.c.l.b16 %v1032
        %v1075 = vunpack.c.h.b16 %v1031
        %v1076 = vunpack.c.h.b16 %v1032
        %v1077 = vunpack.c.l.b16 %v1033
        %v1078 = vunpack.c.l.b16 %v1034
        %v1079 = vunpack.c.h.b16 %v1033
        %v1080 = vunpack.c.h.b16 %v1034
        %v1081 = vunpack.c.l.b16 %v1035
        %v1082 = vunpack.c.l.b16 %v1036
        %v1083 = vunpack.c.h.b16 %v1035
        %v1084 = vunpack.c.h.b16 %v1036
        %v1085 = vpack.c.b16 %v1054, %v1053
        %v1086 = vpack.c.b16 %v1056, %v1055
        %v1087 = vpack.c.b16 %v1058, %v1057
        %v1088 = vpack.c.b16 %v1060, %v1059
        %v1089 = vpack.c.b16 %v1062, %v1061
        %v1090 = vpack.c.b16 %v1064, %v1063
        %v1091 = vpack.c.b16 %v1066, %v1065
        %v1092 = vpack.c.b16 %v1068, %v1067
        %v1093 = vpack.c.b16 %v1070, %v1069
        %v1094 = vpack.c.b16 %v1072, %v1071
        %v1095 = vpack.c.b16 %v1074, %v1073
        %v1096 = vpack.c.b16 %v1076, %v1075
        %v1097 = vpack.c.b16 %v1078, %v1077
        %v1098 = vpack.c.b16 %v1080, %v1079
        %v1099 = vpack.c.b16 %v1082, %v1081
        %v1100 = vpack.c.b16 %v1084, %v1083
        %1117 = vst [vmem:[%s271] sm:$0xff] %v1085
        %1118 = vst [vmem:[%s271 + $0x8] sm:$0xff] %v1086
        %1119 = vst [vmem:[%s271 + $0x10] sm:$0xff] %v1087
        %1120 = vst [vmem:[%s271 + $0x18] sm:$0xff] %v1088
        %1121 = vst [vmem:[%s271 + $0x20] sm:$0xff] %v1089
        %1122 = vst [vmem:[%s271 + $0x28] sm:$0xff] %v1090
        %1123 = vst [vmem:[%s271 + $0x30] sm:$0xff] %v1091
        %1124 = vst [vmem:[%s271 + $0x38] sm:$0xff] %v1092
        %1125 = vst [vmem:[%s271 + $0x40] sm:$0xff] %v1093
        %1126 = vst [vmem:[%s271 + $0x48] sm:$0xff] %v1094
        %1127 = vst [vmem:[%s271 + $0x50] sm:$0xff] %v1095
        %1128 = vst [vmem:[%s271 + $0x58] sm:$0xff] %v1096
        %1129 = vst [vmem:[%s271 + $0x60] sm:$0xff] %v1097
        %1130 = vst [vmem:[%s271 + $0x68] sm:$0xff] %v1098
        %1131 = vst [vmem:[%s271 + $0x70] sm:$0xff] %v1099
        %1132 = vst [vmem:[%s271 + $0x78] sm:$0xff] %v1100
        %s1133 = sand.u32 %s141, 1
        %s1134 = scalar_lea.sflag [#allocation5], %s1133
        %s1135 = sand.u32 %s141, 1
        %s1136 = smul.addr %s1135, 128
        %s1137 = scalar_lea.vmem [#allocation9], %s1136
        // Predicated region
        $region53: #{tpu_custom_call.1} parent=39 // pred_check
          %p1138 = pneg %p151
        $region54: #{tpu_custom_call.1} parent=39 // pred_check_branch
          %1140 = sbr.rel (%p1138) target = $region56
        $region55: #{tpu_custom_call.1} parent=39 // pred_region
          %s1141 = smul.u32 16, %s23
          %s1143 = ssub.s32 2048, 2048
          %1144 = vsyncadd %s1134, %s1143
          %s1145 = smul.addr %s1141, 2
          %s1146 = smul.addr %s1145, 64
          %s1147 = scalar_lea.hbm %s5, %s1146
          %s1148 = sshll.u32 %s1137, 4
          %s1149 = int_to_ptr.vmem [resolvable:$true] %s1148
          %1154 = dma.vmem_to_hbm [thread:$0]  %s1149, 2048, %s1147, %s1134, 128, 128, 8
        $region56: #{tpu_custom_call.1} parent=39 // pred_fallthru
          _
      $region40: #{tpu_custom_call.1} parent=5 // pred_fallthru
        _
      %p1155 = scmp.le.s32.totalorder 2, %s18
      // Predicated region
      $region57: #{tpu_custom_call.1} parent=5 // pred_check
        %p1156 = pneg %p1155
      $region58: #{tpu_custom_call.1} parent=5 // pred_check_branch
        %1158 = sbr.rel (%p1156) target = $region60
      $region59: #{tpu_custom_call.1} parent=5 // pred_region
        %s1159 = ssub.s32 %s18, 2
        // Predicated region
        $region61: #{tpu_custom_call.1} parent=59 // pred_check
          %p1160 = pneg %p157
        $region62: #{tpu_custom_call.1} parent=59 // pred_check_branch
          %1162 = sbr.rel (%p1160) target = $region64
        $region63: #{tpu_custom_call.1} parent=59 // pred_region
          %s1163 = sand.u32 %s142, 1
          %s1164 = scalar_lea.sflag [#allocation5], %s1163
          %s1165 = sand.u32 %s142, 1
          %s1166 = smul.addr %s1165, 128
          %s1167 = scalar_lea.vmem [#allocation9], %s1166
          %1168 = dma.done %s1164, 2048
        $region64: #{tpu_custom_call.1} parent=59 // pred_fallthru
          _
      $region60: #{tpu_custom_call.1} parent=5 // pred_fallthru
        _
    $region6: #{tpu_custom_call.1} parent=1 // loop_footer
      %s22 = sadd.s32 1, %s18
    $region7: #{tpu_custom_call.1} parent=1 // loop_footer_branch
      %17 = sbr.rel target = $region3
    $region8: #{tpu_custom_call.1} parent=1 // loop_exit
      _
    %1169 = vsyncpa [#allocation4], 1
    %s1170 = scalar_lea.sflag [#allocation4], 1
    %1171 = vsyncpa %s1170, 1
    %1172 = vsyncpa [#allocation7], 1
    %1173 = vsyncpa [#allocation5], 1
    %s1174 = scalar_lea.sflag [#allocation5], 1
    %1175 = vsyncpa %s1174, 1

</llo_original>
